<compile_context>
chip_gen: v6e
topology: v6e:2x2x1
jax: 0.10.0
libtpu: 0.0.40
codegen_flags: <defaults>
</compile_context>

<pallas_src>
import jax
import jax.numpy as jnp
from jax.experimental import pallas as pl
from jax.experimental.pallas import tpu as pltpu

# Module constants (DIM_ENCODE must equal 64 = self.dim so that p_net's input
# width dim*2 = 128 matches cat([obs_enc, z]).shape[-1]).
DIM_OBS = 32
DIM_HIDDEN = 128
DIM_ENCODE = 64
NUM_PAR_PF = 8
OUT_DIM = 2
OUT_PAD = 128  # lane-dense padded output width (real outputs in cols [:2])

# Indices into the packed (5, 128, 128) weight stack / (6, 128) bias stack.
W_PW1, W_W2, W_PW2, W_PW3, W_PW4 = 0, 1, 2, 3, 4
B_B1, B_B2, B_PB1, B_PB2, B_PB3, B_PB4 = 0, 1, 2, 3, 4, 5


def _proposer_kernel(num_par, ts, batch):
    n_rows = num_par * batch

    def kernel(obs_ref, z_ref, w1_ref, w3_ref, wstack_ref, bstack_ref, b3_ref,
               out_ref):
        bf16 = jnp.bfloat16
        f32 = jnp.float32

        bstack = bstack_ref[...]                                  # (6, 128) f32

        # ---- obs_encode: 3x (Linear -> ReLU) at (TS*B, .) ----
        obs = obs_ref[...].reshape(ts * batch, DIM_OBS)           # bf16
        h = jnp.dot(obs, w1_ref[...], preferred_element_type=f32) + bstack[B_B1:B_B1 + 1]
        h = jnp.maximum(h, 0.0)
        h = jnp.dot(h.astype(bf16), wstack_ref[W_W2],
                    preferred_element_type=f32) + bstack[B_B2:B_B2 + 1]
        h = jnp.maximum(h, 0.0)
        enc = jnp.dot(h.astype(bf16), w3_ref[...],
                      preferred_element_type=f32) + b3_ref[...]
        enc = jnp.maximum(enc, 0.0)                               # (TS*B, DIM_ENCODE)

        # ---- p_net layer 1 via algebraic split of the concat matmul ----
        #   cat([enc.repeat(P,1), z]) @ pw1 + pb1
        #     == bcast_over_particles(enc @ pw1_top) + z @ pw1_bot + pb1
        pw1 = wstack_ref[W_PW1]                                   # (128, 128) bf16
        enc_part = jnp.dot(enc.astype(bf16), pw1[:DIM_ENCODE, :],
                           preferred_element_type=f32)            # (TS*B, H)
        z = z_ref[...].reshape(ts * n_rows, DIM_ENCODE)           # bf16
        z_part = jnp.dot(z, pw1[DIM_ENCODE:, :],
                         preferred_element_type=f32)              # (TS*P*B, H)
        # Broadcast-add across the particle axis, per folded step (no tiled copy).
        h = (z_part.reshape(ts, num_par, batch, DIM_HIDDEN)
             + enc_part.reshape(ts, 1, batch, DIM_HIDDEN)
             + bstack[B_PB1:B_PB1 + 1])
        h = jnp.maximum(h, 0.0).reshape(ts * n_rows, DIM_HIDDEN)

        # ---- p_net layers 2, 3 ----
        h = jnp.dot(h.astype(bf16), wstack_ref[W_PW2],
                    preferred_element_type=f32) + bstack[B_PB2:B_PB2 + 1]
        h = jnp.maximum(h, 0.0)
        h = jnp.dot(h.astype(bf16), wstack_ref[W_PW3],
                    preferred_element_type=f32) + bstack[B_PB3:B_PB3 + 1]
        h = jnp.maximum(h, 0.0)

        # ---- final layer, lane-dense padded to OUT_PAD, stored as bf16 ----
        out = jnp.dot(h.astype(bf16), wstack_ref[W_PW4],
                      preferred_element_type=f32) + bstack[B_PB4:B_PB4 + 1]
        out_ref[...] = out.reshape(ts, n_rows, OUT_PAD).astype(out_ref.dtype)

    return kernel


def choose_ts(T, B, target_rows=256):
    """Pick steps-per-block: encoder M = ts*B aims for >= target_rows (full MXU
    occupancy on v6e/v7x) while keeping >= 2 grid iterations (megacore)."""
    divisors = [d for d in range(1, T + 1) if T % d == 0]
    cands = [d for d in divisors if T // d >= 2] or divisors
    for d in cands:
        if d * B >= target_rows:
            return d
    return cands[-1]


def proposer_forward(obs, z, kernel_params, num_par=NUM_PAR_PF, ts=None):
    """obs: (T, B, DIM_OBS), z: (T, num_par*B, DIM_ENCODE).

    Returns (T, num_par*B, 2) f32 — one ProposerNetwork forward per step t.
    z plays the role of torch.randn_like(obs_enc.repeat(num_par, 1)).
    """
    T, B, _ = obs.shape
    n_rows = num_par * B
    assert z.shape == (T, n_rows, DIM_ENCODE)

    if ts is None:
        ts = choose_ts(T, B)
    assert T % ts == 0
    n_blocks = T // ts

    # bf16 input streams: halves obs/z HBM reads, removes in-kernel pack passes.
    obs_bf = obs.astype(jnp.bfloat16)
    z_bf = z.astype(jnp.bfloat16)

    def step_spec(rows, cols):
        return pl.BlockSpec((ts, rows, cols), lambda g: (g, 0, 0))

    def const_spec(arr):
        nd = arr.ndim
        # constant index_map -> weights DMA'd once, VMEM-resident across the grid
        return pl.BlockSpec(arr.shape, lambda g, _n=nd: (0,) * _n)

    in_specs = [step_spec(B, DIM_OBS), step_spec(n_rows, DIM_ENCODE)]
    in_specs += [const_spec(p) for p in kernel_params]
    out_spec = step_spec(n_rows, OUT_PAD)

    # NOTE: for very large ts (multi-thousand-row blocks) set
    # vmem_limit_bytes explicitly (v7x has 64 MiB physical VMEM).
    padded = pl.pallas_call(
        _proposer_kernel(num_par, ts, B),
        out_shape=jax.ShapeDtypeStruct((T, n_rows, OUT_PAD), jnp.bfloat16),
        grid_spec=pltpu.PrefetchScalarGridSpec(
            num_scalar_prefetch=0,
            grid=(n_blocks,),
            in_specs=in_specs,
            out_specs=out_spec,
        ),
        compiler_params=pltpu.CompilerParams(
            dimension_semantics=("parallel",),   # megacore: split blocks across TCs
        ),
    )(obs_bf, z_bf, *kernel_params)

    return padded[:, :, :OUT_DIM].astype(jnp.float32)


def init_torch_like_params(key):
    """Deterministic synthetic weights, same shapes as the torch module.

    Weights stored transposed (in, out), biases as (1, out), all float32.
    """
    shapes = [
        (DIM_OBS, DIM_HIDDEN), (DIM_HIDDEN,),          # obs_encode L1
        (DIM_HIDDEN, DIM_HIDDEN), (DIM_HIDDEN,),       # obs_encode L2
        (DIM_HIDDEN, DIM_ENCODE), (DIM_ENCODE,),       # obs_encode L3
        (2 * DIM_ENCODE, DIM_HIDDEN), (DIM_HIDDEN,),   # p_net L1
        (DIM_HIDDEN, DIM_HIDDEN), (DIM_HIDDEN,),       # p_net L2
        (DIM_HIDDEN, DIM_HIDDEN), (DIM_HIDDEN,),       # p_net L3
        (DIM_HIDDEN, OUT_DIM), (OUT_DIM,),             # p_net L4
    ]
    keys = jax.random.split(key, len(shapes))
    params = []
    for k, s in zip(keys, shapes):
        if len(s) == 1:
            params.append(jax.random.uniform(k, (1, s[0]), jnp.float32, -0.05, 0.05))
        else:
            bound = 1.0 / (s[0] ** 0.5)
            params.append(jax.random.uniform(k, s, jnp.float32, -bound, bound))
    return params


def prepare_kernel_params(params):
    """Torch-layout params -> packed kernel operand list.

    - pw4 / pb4 zero-padded to OUT_PAD columns (exact zeros; wrapper slices [:2])
    - all five 128x128 matrices stacked into one bf16 (5,128,128) array
    - all six 128-wide biases stacked into one f32 (6,128) array
    - w1 (32,128) / w3 (128,64) bf16; b3 (1,64) f32 kept separate
    """
    (w1, b1, w2, b2, w3, b3, pw1, pb1, pw2, pb2, pw3, pb3, pw4, pb4) = params
    bf16 = jnp.bfloat16
    pw4_pad = jnp.zeros((DIM_HIDDEN, OUT_PAD), jnp.float32).at[:, :OUT_DIM].set(pw4)
    pb4_pad = jnp.zeros((1, OUT_PAD), jnp.float32).at[:, :OUT_DIM].set(pb4)
    wstack = jnp.stack([pw1, w2, pw2, pw3, pw4_pad], axis=0).astype(bf16)   # (5,128,128)
    bstack = jnp.concatenate([b1, b2, pb1, pb2, pb3, pb4_pad], axis=0)      # (6,128) f32
    return [w1.astype(bf16), w3.astype(bf16), wstack, bstack, b3]


def reference_forward(obs_bf, z_bf, torch_like_params, num_par=NUM_PAR_PF):
    """Pure-JAX reference mirroring the torch module (same bf16 weights, f32
    accumulation), using the original repeat -> concat -> single matmul path."""
    (w1, b1, w2, b2, w3, b3, pw1, pb1, pw2, pb2, pw3, pb3, pw4, pb4) = torch_like_params
    bf16 = jnp.bfloat16
    f32 = jnp.float32

    def mm(x, w):
        return jnp.dot(x.astype(bf16), w.astype(bf16), preferred_element_type=f32)

    def single(obs_t, z_t):
        h = jax.nn.relu(mm(obs_t, w1) + b1)
        h = jax.nn.relu(mm(h, w2) + b2)
        enc = jax.nn.relu(mm(h, w3) + b3)
        enc_rep = jnp.tile(enc, (num_par, 1))            # torch .repeat(num_par, 1)
        x = jnp.concatenate([enc_rep, z_t.astype(f32)], axis=-1)
        h = jax.nn.relu(mm(x, pw1) + pb1)
        h = jax.nn.relu(mm(h, pw2) + pb2)
        h = jax.nn.relu(mm(h, pw3) + pb3)
        return mm(h, pw4) + pb4

    return jax.vmap(single)(obs_bf, z_bf)


if __name__ == "__main__":
    key = jax.random.PRNGKey(0)
    k_param, k_obs, k_z = jax.random.split(key, 3)

    # Small demo shapes: T particle-filter steps, each with batch B observations.
    # (In production, T / B grow and choose_ts folds enough steps per block to
    # reach MXU M >= 256 while keeping >= 2 grid iterations for v7x megacore.)
    T, B = 8, 2
    obs = jax.random.normal(k_obs, (T, B, DIM_OBS), jnp.float32)
    # z = torch.randn_like(obs_enc.repeat(num_par, 1)) — standard normal, drawn
    # in JAX glue and passed in (keeps the kernel deterministic vs. the reference).
    z = jax.random.normal(k_z, (T, NUM_PAR_PF * B, DIM_ENCODE), jnp.float32)

    torch_like_params = init_torch_like_params(k_param)
    kparams = prepare_kernel_params(torch_like_params)

    proposal = proposer_forward(obs, z, kparams, num_par=NUM_PAR_PF)
    proposal = jax.block_until_ready(proposal)

    ref = reference_forward(obs.astype(jnp.bfloat16), z.astype(jnp.bfloat16),
                            torch_like_params, num_par=NUM_PAR_PF)
    assert proposal.shape == (T, NUM_PAR_PF * B, OUT_DIM)
    assert jnp.allclose(proposal, ref, atol=2e-2, rtol=2e-2), "mismatch vs JAX reference"

    print("KERNEL_OK")
</pallas_src>

<mosaic_0001>
module attributes {stable_mosaic.version = 11 : i64} {
  func.func @kernel(%arg0: i32, %arg1: memref<4x2x32xbf16, #tpu.memory_space<vmem>>, %arg2: memref<4x16x64xbf16, #tpu.memory_space<vmem>>, %arg3: memref<32x128xbf16, #tpu.memory_space<vmem>>, %arg4: memref<128x64xbf16, #tpu.memory_space<vmem>>, %arg5: memref<5x128x128xbf16, #tpu.memory_space<vmem>>, %arg6: memref<6x128xf32, #tpu.memory_space<vmem>>, %arg7: memref<1x64xf32, #tpu.memory_space<vmem>>, %arg8: memref<4x16x128xbf16, #tpu.memory_space<vmem>>) attributes {dimension_semantics = [#tpu.dimension_semantics<parallel>], iteration_bounds = array<i64: 2>, scalar_prefetch = 0 : i64, scratch_operands = 0 : i64, tpu.core_type = #tpu.core_type<tc>, window_params = [{transform_indices = @transform_0, window_bounds = array<i64: 4, 2, 32>}, {transform_indices = @transform_1, window_bounds = array<i64: 4, 16, 64>}, {pipeline_mode = #tpu.pipeline_mode<synchronous>, transform_indices = @transform_2, window_bounds = array<i64: 32, 128>}, {pipeline_mode = #tpu.pipeline_mode<synchronous>, transform_indices = @transform_3, window_bounds = array<i64: 128, 64>}, {pipeline_mode = #tpu.pipeline_mode<synchronous>, transform_indices = @transform_4, window_bounds = array<i64: 5, 128, 128>}, {pipeline_mode = #tpu.pipeline_mode<synchronous>, transform_indices = @transform_5, window_bounds = array<i64: 6, 128>}, {pipeline_mode = #tpu.pipeline_mode<synchronous>, transform_indices = @transform_6, window_bounds = array<i64: 1, 64>}, {transform_indices = @transform_7, window_bounds = array<i64: 4, 16, 128>}]} {
    %c0 = arith.constant 0 : index
    %c0_0 = arith.constant 0 : index
    %0 = vector.load %arg6[%c0, %c0_0] : memref<6x128xf32, #tpu.memory_space<vmem>>, vector<6x128xf32>
    %c0_1 = arith.constant 0 : index
    %c0_2 = arith.constant 0 : index
    %c0_3 = arith.constant 0 : index
    %1 = vector.load %arg1[%c0_1, %c0_2, %c0_3] : memref<4x2x32xbf16, #tpu.memory_space<vmem>>, vector<4x2x32xbf16>
    %2 = vector.shape_cast %1 : vector<4x2x32xbf16> to vector<8x32xbf16>
    %c0_4 = arith.constant 0 : index
    %c0_5 = arith.constant 0 : index
    %3 = vector.load %arg3[%c0_4, %c0_5] : memref<32x128xbf16, #tpu.memory_space<vmem>>, vector<32x128xbf16>
    %cst = arith.constant dense<0.000000e+00> : vector<8x128xf32>
    %4 = tpu.matmul %2, %3, %cst {dimension_numbers = #tpu.dot_dimension_numbers<[1], [0], [0], [1], [0, 0, 1, 1], [], []>} : vector<8x32xbf16>, vector<32x128xbf16>, vector<8x128xf32> -> vector<8x128xf32>
    %5 = vector.extract_strided_slice %0 {offsets = [0, 0], sizes = [1, 128], strides = [1, 1]} : vector<6x128xf32> to vector<1x128xf32>
    %6 = vector.broadcast %5 : vector<1x128xf32> to vector<8x128xf32>
    %7 = arith.addf %4, %6 : vector<8x128xf32>
    %cst_6 = arith.constant 0.000000e+00 : f32
    %8 = vector.broadcast %cst_6 : f32 to vector<8x128xf32>
    %9 = arith.maximumf %7, %8 : vector<8x128xf32>
    %10 = arith.truncf %9 : vector<8x128xf32> to vector<8x128xbf16>
    %c1 = arith.constant 1 : index
    %c0_7 = arith.constant 0 : index
    %c0_8 = arith.constant 0 : index
    %11 = vector.load %arg5[%c1, %c0_7, %c0_8] : memref<5x128x128xbf16, #tpu.memory_space<vmem>>, vector<1x128x128xbf16>
    %12 = vector.shape_cast %11 : vector<1x128x128xbf16> to vector<128x128xbf16>
    %cst_9 = arith.constant dense<0.000000e+00> : vector<8x128xf32>
    %13 = tpu.matmul %10, %12, %cst_9 {dimension_numbers = #tpu.dot_dimension_numbers<[1], [0], [0], [1], [0, 0, 1, 1], [], []>} : vector<8x128xbf16>, vector<128x128xbf16>, vector<8x128xf32> -> vector<8x128xf32>
    %14 = vector.extract_strided_slice %0 {offsets = [1, 0], sizes = [1, 128], strides = [1, 1]} : vector<6x128xf32> to vector<1x128xf32>
    %15 = vector.broadcast %14 : vector<1x128xf32> to vector<8x128xf32>
    %16 = arith.addf %13, %15 : vector<8x128xf32>
    %cst_10 = arith.constant 0.000000e+00 : f32
    %17 = vector.broadcast %cst_10 : f32 to vector<8x128xf32>
    %18 = arith.maximumf %16, %17 : vector<8x128xf32>
    %19 = arith.truncf %18 : vector<8x128xf32> to vector<8x128xbf16>
    %c0_11 = arith.constant 0 : index
    %c0_12 = arith.constant 0 : index
    %20 = vector.load %arg4[%c0_11, %c0_12] : memref<128x64xbf16, #tpu.memory_space<vmem>>, vector<128x64xbf16>
    %cst_13 = arith.constant dense<0.000000e+00> : vector<8x64xf32>
    %21 = tpu.matmul %19, %20, %cst_13 {dimension_numbers = #tpu.dot_dimension_numbers<[1], [0], [0], [1], [0, 0, 1, 1], [], []>} : vector<8x128xbf16>, vector<128x64xbf16>, vector<8x64xf32> -> vector<8x64xf32>
    %c0_14 = arith.constant 0 : index
    %c0_15 = arith.constant 0 : index
    %22 = vector.load %arg7[%c0_14, %c0_15] : memref<1x64xf32, #tpu.memory_space<vmem>>, vector<1x64xf32>
    %23 = vector.broadcast %22 : vector<1x64xf32> to vector<8x64xf32>
    %24 = arith.addf %21, %23 : vector<8x64xf32>
    %cst_16 = arith.constant 0.000000e+00 : f32
    %25 = vector.broadcast %cst_16 : f32 to vector<8x64xf32>
    %26 = arith.maximumf %24, %25 : vector<8x64xf32>
    %c0_17 = arith.constant 0 : index
    %c0_18 = arith.constant 0 : index
    %c0_19 = arith.constant 0 : index
    %27 = vector.load %arg5[%c0_17, %c0_18, %c0_19] : memref<5x128x128xbf16, #tpu.memory_space<vmem>>, vector<1x128x128xbf16>
    %28 = vector.shape_cast %27 : vector<1x128x128xbf16> to vector<128x128xbf16>
    %29 = arith.truncf %26 : vector<8x64xf32> to vector<8x64xbf16>
    %30 = vector.extract_strided_slice %28 {offsets = [0, 0], sizes = [64, 128], strides = [1, 1]} : vector<128x128xbf16> to vector<64x128xbf16>
    %cst_20 = arith.constant dense<0.000000e+00> : vector<8x128xf32>
    %31 = tpu.matmul %29, %30, %cst_20 {dimension_numbers = #tpu.dot_dimension_numbers<[1], [0], [0], [1], [0, 0, 1, 1], [], []>} : vector<8x64xbf16>, vector<64x128xbf16>, vector<8x128xf32> -> vector<8x128xf32>
    %c0_21 = arith.constant 0 : index
    %c0_22 = arith.constant 0 : index
    %c0_23 = arith.constant 0 : index
    %32 = vector.load %arg2[%c0_21, %c0_22, %c0_23] : memref<4x16x64xbf16, #tpu.memory_space<vmem>>, vector<4x16x64xbf16>
    %33 = vector.shape_cast %32 : vector<4x16x64xbf16> to vector<64x64xbf16>
    %34 = vector.extract_strided_slice %28 {offsets = [64, 0], sizes = [64, 128], strides = [1, 1]} : vector<128x128xbf16> to vector<64x128xbf16>
    %cst_24 = arith.constant dense<0.000000e+00> : vector<64x128xf32>
    %35 = tpu.matmul %33, %34, %cst_24 {dimension_numbers = #tpu.dot_dimension_numbers<[1], [0], [0], [1], [0, 0, 1, 1], [], []>} : vector<64x64xbf16>, vector<64x128xbf16>, vector<64x128xf32> -> vector<64x128xf32>
    %36 = vector.shape_cast %35 : vector<64x128xf32> to vector<4x8x2x128xf32>
    %37 = vector.shape_cast %31 : vector<8x128xf32> to vector<4x1x2x128xf32>
    %38 = vector.broadcast %37 : vector<4x1x2x128xf32> to vector<4x8x2x128xf32>
    %39 = arith.addf %36, %38 : vector<4x8x2x128xf32>
    %40 = vector.extract_strided_slice %0 {offsets = [2, 0], sizes = [1, 128], strides = [1, 1]} : vector<6x128xf32> to vector<1x128xf32>
    %41 = vector.shape_cast %40 : vector<1x128xf32> to vector<1x1x1x128xf32>
    %42 = vector.broadcast %41 : vector<1x1x1x128xf32> to vector<4x8x2x128xf32>
    %43 = arith.addf %39, %42 : vector<4x8x2x128xf32>
    %cst_25 = arith.constant 0.000000e+00 : f32
    %44 = vector.broadcast %cst_25 : f32 to vector<4x8x2x128xf32>
    %45 = arith.maximumf %43, %44 : vector<4x8x2x128xf32>
    %46 = vector.shape_cast %45 : vector<4x8x2x128xf32> to vector<64x128xf32>
    %47 = arith.truncf %46 : vector<64x128xf32> to vector<64x128xbf16>
    %c2 = arith.constant 2 : index
    %c0_26 = arith.constant 0 : index
    %c0_27 = arith.constant 0 : index
    %48 = vector.load %arg5[%c2, %c0_26, %c0_27] : memref<5x128x128xbf16, #tpu.memory_space<vmem>>, vector<1x128x128xbf16>
    %49 = vector.shape_cast %48 : vector<1x128x128xbf16> to vector<128x128xbf16>
    %cst_28 = arith.constant dense<0.000000e+00> : vector<64x128xf32>
    %50 = tpu.matmul %47, %49, %cst_28 {dimension_numbers = #tpu.dot_dimension_numbers<[1], [0], [0], [1], [0, 0, 1, 1], [], []>} : vector<64x128xbf16>, vector<128x128xbf16>, vector<64x128xf32> -> vector<64x128xf32>
    %51 = vector.extract_strided_slice %0 {offsets = [3, 0], sizes = [1, 128], strides = [1, 1]} : vector<6x128xf32> to vector<1x128xf32>
    %52 = vector.broadcast %51 : vector<1x128xf32> to vector<64x128xf32>
    %53 = arith.addf %50, %52 : vector<64x128xf32>
    %cst_29 = arith.constant 0.000000e+00 : f32
    %54 = vector.broadcast %cst_29 : f32 to vector<64x128xf32>
    %55 = arith.maximumf %53, %54 : vector<64x128xf32>
    %56 = arith.truncf %55 : vector<64x128xf32> to vector<64x128xbf16>
    %c3 = arith.constant 3 : index
    %c0_30 = arith.constant 0 : index
    %c0_31 = arith.constant 0 : index
    %57 = vector.load %arg5[%c3, %c0_30, %c0_31] : memref<5x128x128xbf16, #tpu.memory_space<vmem>>, vector<1x128x128xbf16>
    %58 = vector.shape_cast %57 : vector<1x128x128xbf16> to vector<128x128xbf16>
    %cst_32 = arith.constant dense<0.000000e+00> : vector<64x128xf32>
    %59 = tpu.matmul %56, %58, %cst_32 {dimension_numbers = #tpu.dot_dimension_numbers<[1], [0], [0], [1], [0, 0, 1, 1], [], []>} : vector<64x128xbf16>, vector<128x128xbf16>, vector<64x128xf32> -> vector<64x128xf32>
    %60 = vector.extract_strided_slice %0 {offsets = [4, 0], sizes = [1, 128], strides = [1, 1]} : vector<6x128xf32> to vector<1x128xf32>
    %61 = vector.broadcast %60 : vector<1x128xf32> to vector<64x128xf32>
    %62 = arith.addf %59, %61 : vector<64x128xf32>
    %cst_33 = arith.constant 0.000000e+00 : f32
    %63 = vector.broadcast %cst_33 : f32 to vector<64x128xf32>
    %64 = arith.maximumf %62, %63 : vector<64x128xf32>
    %65 = arith.truncf %64 : vector<64x128xf32> to vector<64x128xbf16>
    %c4 = arith.constant 4 : index
    %c0_34 = arith.constant 0 : index
    %c0_35 = arith.constant 0 : index
    %66 = vector.load %arg5[%c4, %c0_34, %c0_35] : memref<5x128x128xbf16, #tpu.memory_space<vmem>>, vector<1x128x128xbf16>
    %67 = vector.shape_cast %66 : vector<1x128x128xbf16> to vector<128x128xbf16>
    %cst_36 = arith.constant dense<0.000000e+00> : vector<64x128xf32>
    %68 = tpu.matmul %65, %67, %cst_36 {dimension_numbers = #tpu.dot_dimension_numbers<[1], [0], [0], [1], [0, 0, 1, 1], [], []>} : vector<64x128xbf16>, vector<128x128xbf16>, vector<64x128xf32> -> vector<64x128xf32>
    %69 = vector.extract_strided_slice %0 {offsets = [5, 0], sizes = [1, 128], strides = [1, 1]} : vector<6x128xf32> to vector<1x128xf32>
    %70 = vector.broadcast %69 : vector<1x128xf32> to vector<64x128xf32>
    %71 = arith.addf %68, %70 : vector<64x128xf32>
    %72 = vector.shape_cast %71 : vector<64x128xf32> to vector<4x16x128xf32>
    %73 = arith.truncf %72 : vector<4x16x128xf32> to vector<4x16x128xbf16>
    %c0_37 = arith.constant 0 : index
    %c0_38 = arith.constant 0 : index
    %c0_39 = arith.constant 0 : index
    %74 = vector.load %arg8[%c0_37, %c0_38, %c0_39] : memref<4x16x128xbf16, #tpu.memory_space<vmem>>, vector<4x16x128xbf16>
    tpu.vector_store %arg8[%c0_37, %c0_38, %c0_39], %73 {strides = array<i32>} : memref<4x16x128xbf16, #tpu.memory_space<vmem>>, vector<4x16x128xbf16>,
    return
  }
  func.func @transform_0(%arg0: i32) -> (i32, i32, i32) {
    %c0_i32 = arith.constant 0 : i32
    %c0_i32_0 = arith.constant 0 : i32
    %c0_i32_1 = arith.constant 0 : i32
    return %arg0, %c0_i32, %c0_i32_0 : i32, i32, i32
  }
  func.func @transform_1(%arg0: i32) -> (i32, i32, i32) {
    %c0_i32 = arith.constant 0 : i32
    %c0_i32_0 = arith.constant 0 : i32
    %c0_i32_1 = arith.constant 0 : i32
    return %arg0, %c0_i32, %c0_i32_0 : i32, i32, i32
  }
  func.func @transform_2(%arg0: i32) -> (i32, i32) {
    %c0_i32 = arith.constant 0 : i32
    %c0_i32_0 = arith.constant 0 : i32
    %c0_i32_1 = arith.constant 0 : i32
    return %c0_i32, %c0_i32_0 : i32, i32
  }
  func.func @transform_3(%arg0: i32) -> (i32, i32) {
    %c0_i32 = arith.constant 0 : i32
    %c0_i32_0 = arith.constant 0 : i32
    %c0_i32_1 = arith.constant 0 : i32
    return %c0_i32, %c0_i32_0 : i32, i32
  }
  func.func @transform_4(%arg0: i32) -> (i32, i32, i32) {
    %c0_i32 = arith.constant 0 : i32
    %c0_i32_0 = arith.constant 0 : i32
    %c0_i32_1 = arith.constant 0 : i32
    %c0_i32_2 = arith.constant 0 : i32
    return %c0_i32, %c0_i32_0, %c0_i32_1 : i32, i32, i32
  }
  func.func @transform_5(%arg0: i32) -> (i32, i32) {
    %c0_i32 = arith.constant 0 : i32
    %c0_i32_0 = arith.constant 0 : i32
    %c0_i32_1 = arith.constant 0 : i32
    return %c0_i32, %c0_i32_0 : i32, i32
  }
  func.func @transform_6(%arg0: i32) -> (i32, i32) {
    %c0_i32 = arith.constant 0 : i32
    %c0_i32_0 = arith.constant 0 : i32
    %c0_i32_1 = arith.constant 0 : i32
    return %c0_i32, %c0_i32_0 : i32, i32
  }
  func.func @transform_7(%arg0: i32) -> (i32, i32, i32) {
    %c0_i32 = arith.constant 0 : i32
    %c0_i32_0 = arith.constant 0 : i32
    %c0_i32_1 = arith.constant 0 : i32
    return %arg0, %c0_i32, %c0_i32_0 : i32, i32, i32
  }
}

</mosaic_0001>

<llo_original>
// kernel: tpu_custom_call.1
$region0: #{tpu_custom_call.1}
  #allocation0 [shape = 'u32[]', space=smem, size = 0x4, offset = 0x4, fixed_abs, tag = 'smem constant byte address 0x4 - core index']
  #allocation1 [shape = 'u32[144,128]{1,0:T(1,128)}', space=vmem, size = 0x12000, scoped, tag = 'internal scratch']
  %s0 = inlined_call_operand.vmem [shape: bf16[8,2,32], index: 0, kind: input, shape index: {}]
  %s1 = inlined_call_operand.vmem [shape: bf16[8,16,64], index: 1, kind: input, shape index: {}]
  %s2 = inlined_call_operand.vmem [shape: bf16[32,128], index: 2, kind: input, shape index: {}]
  %s3 = inlined_call_operand.vmem [shape: bf16[128,64], index: 3, kind: input, shape index: {}]
  %s4 = inlined_call_operand.hbm [shape: bf16[5,128,128], index: 4, kind: input, shape index: {}]
  %s5 = inlined_call_operand.vmem [shape: f32[6,128], index: 5, kind: input, shape index: {}]
  %s6 = inlined_call_operand.vmem [shape: f32[1,64], index: 6, kind: input, shape index: {}]
  %s7 = inlined_call_operand.hbm [shape: bf16[8,16,128], index: 7, kind: output, shape index: {}]
  %s8 = sld [smem:[#allocation0]]
  $region65: #{tpu_custom_call.1} parent=0
    _
  %s10 = ssub.s32 1, %s8
  %s11 = scalar_select 0, %s10, %s8
  $region1: #{tpu_custom_call.1} parent=0
    #allocation2 [shape = 'u8[163840]{0}', space=vmem, size = 0x28000, scoped, tag = 'input window, operand 4, single buffered']
    #allocation3 [shape = 's32[2]{0}', space=sflag, size = 0x8, scoped, tag = 'scoped memory for tpu_custom_call.1']
    #allocation4 [shape = 's32[2]{0}', space=sflag, size = 0x8, scoped, tag = 'scoped memory for tpu_custom_call.1']
    #allocation5 [shape = 'u8[32768]{0}', space=vmem, size = 0x8000, scoped, tag = 'output window, operand 0']
    %12 = vsyncpa [#allocation3], 0
    %13 = vsyncpa [#allocation4], 0
    %s14 = scalar_lea.sflag [#allocation4], 1
    %15 = vsyncpa %s14, 0
    loop: start=0, step=1, limit=4
    $region2: #{tpu_custom_call.1} parent=1 // loop_pre_header
      _
    $region3: #{tpu_custom_call.1} parent=1 // loop_header
      %s17 = sphi 0, %s21
      %p18 = scmp.ge.s32.totalorder %s17, 4
      %s27 = sphi 0, %s29
      %s30 = sphi 0, %s27
      %s31 = sphi 0, %s30
      %s47 = sphi 0, %s31
      %s53 = sphi 0, %s55
      %s56 = sphi 0, %s53
      %s57 = sphi 0, %s56
      %s73 = sphi 0, %s57
      %s77 = sphi 0, %s77
      %s79 = sphi 0, %s77
      %s80 = sphi 0, %s79
      %s94 = sphi 0, %s80
      %s98 = sphi 0, %s98
      %s100 = sphi 0, %s98
      %s101 = sphi 0, %s100
      %s115 = sphi 0, %s101
      %s119 = sphi 0, %s119
      %s121 = sphi 0, %s119
      %s122 = sphi 0, %s121
      %s136 = sphi 0, %s122
      %s140 = sphi 0, %s140
      %s142 = sphi 0, %s140
      %s143 = sphi 0, %s142
      %s157 = sphi 0, %s143
      %s161 = sphi 0, %s161
      %s163 = sphi 0, %s161
      %s164 = sphi 0, %s163
      %s178 = sphi 0, %s164
      %s184 = sphi 0, %s186
      %s187 = sphi 0, %s184
      %s188 = sphi 0, %s187
      %s204 = sphi 0, %s188
    $region4: #{tpu_custom_call.1} parent=1 // loop_header_branch
      %20 = sbr.rel (%p18) target = $region8
    $region5: #{tpu_custom_call.1} parent=1 // loop_body
      %s22 = ssub.s32 %s17, 1
      %s23 = ssub.s32 %s17, 2
      %s24 = sadd.s32 %s17, 1
      %s25 = ssub.s32 %s17, %s24
      %p26 = scmp.eq.s32.totalorder %s25, 0
      %s28 = sadd.s32 %s27, 1
      %s29 = scalar_select %p26, %s27, %s28
      %p32 = pneg %p26
      %p33 = scmp.eq.s32.totalorder %s17, 1
      %p34 = por %p32, %p33
      %p35 = scmp.ne.s32.totalorder %s27, %s30
      %p36 = scmp.eq.s32.totalorder %s17, 0
      %p37 = por %p35, %p36
      %p38 = scmp.ne.s32.totalorder %s27, %s30
      %p39 = scmp.eq.s32.totalorder %s22, 1
      %p40 = por %p38, %p39
      %p41 = scmp.ne.s32.totalorder %s30, %s31
      %p42 = scmp.eq.s32.totalorder %s22, 0
      %p43 = por %p41, %p42
      %p44 = scmp.ne.s32.totalorder %s30, %s31
      %p45 = scmp.eq.s32.totalorder %s23, 1
      %p46 = por %p44, %p45
      %p48 = scmp.ne.s32.totalorder %s31, %s47
      %p49 = scmp.eq.s32.totalorder %s23, 0
      %p50 = por %p48, %p49
      %s51 = ssub.s32 %s17, %s24
      %p52 = scmp.eq.s32.totalorder %s51, 0
      %s54 = sadd.s32 %s53, 1
      %s55 = scalar_select %p52, %s53, %s54
      %p58 = pneg %p52
      %p59 = scmp.eq.s32.totalorder %s17, 1
      %p60 = por %p58, %p59
      %p61 = scmp.ne.s32.totalorder %s53, %s56
      %p62 = scmp.eq.s32.totalorder %s17, 0
      %p63 = por %p61, %p62
      %p64 = scmp.ne.s32.totalorder %s53, %s56
      %p65 = scmp.eq.s32.totalorder %s22, 1
      %p66 = por %p64, %p65
      %p67 = scmp.ne.s32.totalorder %s56, %s57
      %p68 = scmp.eq.s32.totalorder %s22, 0
      %p69 = por %p67, %p68
      %p70 = scmp.ne.s32.totalorder %s56, %s57
      %p71 = scmp.eq.s32.totalorder %s23, 1
      %p72 = por %p70, %p71
      %p74 = scmp.ne.s32.totalorder %s57, %s73
      %p75 = scmp.eq.s32.totalorder %s23, 0
      %p76 = por %p74, %p75
      %s78 = sadd.s32 %s77, 1
      %p81 = scmp.eq.s32.totalorder %s17, 1
      %p82 = scmp.ne.s32.totalorder %s77, %s79
      %p83 = scmp.eq.s32.totalorder %s17, 0
      %p84 = por %p82, %p83
      %p85 = scmp.ne.s32.totalorder %s77, %s79
      %p86 = scmp.eq.s32.totalorder %s22, 1
      %p87 = por %p85, %p86
      %p88 = scmp.ne.s32.totalorder %s79, %s80
      %p89 = scmp.eq.s32.totalorder %s22, 0
      %p90 = por %p88, %p89
      %p91 = scmp.ne.s32.totalorder %s79, %s80
      %p92 = scmp.eq.s32.totalorder %s23, 1
      %p93 = por %p91, %p92
      %p95 = scmp.ne.s32.totalorder %s80, %s94
      %p96 = scmp.eq.s32.totalorder %s23, 0
      %p97 = por %p95, %p96
      %s99 = sadd.s32 %s98, 1
      %p102 = scmp.eq.s32.totalorder %s17, 1
      %p103 = scmp.ne.s32.totalorder %s98, %s100
      %p104 = scmp.eq.s32.totalorder %s17, 0
      %p105 = por %p103, %p104
      %p106 = scmp.ne.s32.totalorder %s98, %s100
      %p107 = scmp.eq.s32.totalorder %s22, 1
      %p108 = por %p106, %p107
      %p109 = scmp.ne.s32.totalorder %s100, %s101
      %p110 = scmp.eq.s32.totalorder %s22, 0
      %p111 = por %p109, %p110
      %p112 = scmp.ne.s32.totalorder %s100, %s101
      %p113 = scmp.eq.s32.totalorder %s23, 1
      %p114 = por %p112, %p113
      %p116 = scmp.ne.s32.totalorder %s101, %s115
      %p117 = scmp.eq.s32.totalorder %s23, 0
      %p118 = por %p116, %p117
      %s120 = sadd.s32 %s119, 1
      %p123 = scmp.eq.s32.totalorder %s17, 1
      %p124 = scmp.ne.s32.totalorder %s119, %s121
      %p125 = scmp.eq.s32.totalorder %s17, 0
      %p126 = por %p124, %p125
      %p127 = scmp.ne.s32.totalorder %s119, %s121
      %p128 = scmp.eq.s32.totalorder %s22, 1
      %p129 = por %p127, %p128
      %p130 = scmp.ne.s32.totalorder %s121, %s122
      %p131 = scmp.eq.s32.totalorder %s22, 0
      %p132 = por %p130, %p131
      %p133 = scmp.ne.s32.totalorder %s121, %s122
      %p134 = scmp.eq.s32.totalorder %s23, 1
      %p135 = por %p133, %p134
      %p137 = scmp.ne.s32.totalorder %s122, %s136
      %p138 = scmp.eq.s32.totalorder %s23, 0
      %p139 = por %p137, %p138
      %s141 = sadd.s32 %s140, 1
      %p144 = scmp.eq.s32.totalorder %s17, 1
      %p145 = scmp.ne.s32.totalorder %s140, %s142
      %p146 = scmp.eq.s32.totalorder %s17, 0
      %p147 = por %p145, %p146
      %p148 = scmp.ne.s32.totalorder %s140, %s142
      %p149 = scmp.eq.s32.totalorder %s22, 1
      %p150 = por %p148, %p149
      %p151 = scmp.ne.s32.totalorder %s142, %s143
      %p152 = scmp.eq.s32.totalorder %s22, 0
      %p153 = por %p151, %p152
      %p154 = scmp.ne.s32.totalorder %s142, %s143
      %p155 = scmp.eq.s32.totalorder %s23, 1
      %p156 = por %p154, %p155
      %p158 = scmp.ne.s32.totalorder %s143, %s157
      %p159 = scmp.eq.s32.totalorder %s23, 0
      %p160 = por %p158, %p159
      %s162 = sadd.s32 %s161, 1
      %p165 = scmp.eq.s32.totalorder %s17, 1
      %p166 = scmp.ne.s32.totalorder %s161, %s163
      %p167 = scmp.eq.s32.totalorder %s17, 0
      %p168 = por %p166, %p167
      %p169 = scmp.ne.s32.totalorder %s161, %s163
      %p170 = scmp.eq.s32.totalorder %s22, 1
      %p171 = por %p169, %p170
      %p172 = scmp.ne.s32.totalorder %s163, %s164
      %p173 = scmp.eq.s32.totalorder %s22, 0
      %p174 = por %p172, %p173
      %p175 = scmp.ne.s32.totalorder %s163, %s164
      %p176 = scmp.eq.s32.totalorder %s23, 1
      %p177 = por %p175, %p176
      %p179 = scmp.ne.s32.totalorder %s164, %s178
      %p180 = scmp.eq.s32.totalorder %s23, 0
      %p181 = por %p179, %p180
      %s182 = ssub.s32 %s17, %s24
      %p183 = scmp.eq.s32.totalorder %s182, 0
      %s185 = sadd.s32 %s184, 1
      %s186 = scalar_select %p183, %s184, %s185
      %p189 = pneg %p183
      %p190 = scmp.eq.s32.totalorder %s17, 1
      %p191 = por %p189, %p190
      %p192 = scmp.ne.s32.totalorder %s184, %s187
      %p193 = scmp.eq.s32.totalorder %s17, 0
      %p194 = por %p192, %p193
      %p195 = scmp.ne.s32.totalorder %s184, %s187
      %p196 = scmp.eq.s32.totalorder %s22, 1
      %p197 = por %p195, %p196
      %p198 = scmp.ne.s32.totalorder %s187, %s188
      %p199 = scmp.eq.s32.totalorder %s22, 0
      %p200 = por %p198, %p199
      %p201 = scmp.ne.s32.totalorder %s187, %s188
      %p202 = scmp.eq.s32.totalorder %s23, 1
      %p203 = por %p201, %p202
      %p205 = scmp.ne.s32.totalorder %s188, %s204
      %p206 = scmp.eq.s32.totalorder %s23, 0
      %p207 = por %p205, %p206
      %p208 = scmp.le.s32.totalorder 1, %s17
      %p209 = scmp.lt.s32.totalorder %s17, 3
      %p210 = pnand %p208, %p209
      %p211 = pneg %p210
      // Predicated region
      $region9: #{tpu_custom_call.1} parent=5 // pred_check
        _
      $region10: #{tpu_custom_call.1} parent=5 // pred_check_branch
        %213 = sbr.rel (%p210) target = $region12
      $region11: #{tpu_custom_call.1} parent=5 // pred_region
        %s214 = ssub.s32 %s17, 1
        // Predicated region
        $region13: #{tpu_custom_call.1} parent=11 // pred_check
          %p215 = pneg %p90
        $region14: #{tpu_custom_call.1} parent=11 // pred_check_branch
          %217 = sbr.rel (%p215) target = $region16
        $region15: #{tpu_custom_call.1} parent=11 // pred_region
          _
        $region16: #{tpu_custom_call.1} parent=11 // pred_fallthru
          _
        // Predicated region
        $region17: #{tpu_custom_call.1} parent=11 // pred_check
          %p218 = pneg %p111
        $region18: #{tpu_custom_call.1} parent=11 // pred_check_branch
          %220 = sbr.rel (%p218) target = $region20
        $region19: #{tpu_custom_call.1} parent=11 // pred_region
          _
        $region20: #{tpu_custom_call.1} parent=11 // pred_fallthru
          _
        // Predicated region
        $region21: #{tpu_custom_call.1} parent=11 // pred_check
          %p221 = pneg %p132
        $region22: #{tpu_custom_call.1} parent=11 // pred_check_branch
          %223 = sbr.rel (%p221) target = $region24
        $region23: #{tpu_custom_call.1} parent=11 // pred_region
          %s225 = ssub.s32 5120, 5120
          %226 = vsyncadd [#allocation3], %s225
          %s227 = sshll.u32 [#allocation2], 4
          %s228 = int_to_ptr.vmem [resolvable:$true] %s227
          %233 = dma.hbm_to_vmem [thread:$0]  %s4, 5120, %s228, [#allocation3], 64, 64, 4
        $region24: #{tpu_custom_call.1} parent=11 // pred_fallthru
          _
        // Predicated region
        $region25: #{tpu_custom_call.1} parent=11 // pred_check
          %p234 = pneg %p153
        $region26: #{tpu_custom_call.1} parent=11 // pred_check_branch
          %236 = sbr.rel (%p234) target = $region28
        $region27: #{tpu_custom_call.1} parent=11 // pred_region
          _
        $region28: #{tpu_custom_call.1} parent=11 // pred_fallthru
          _
        // Predicated region
        $region29: #{tpu_custom_call.1} parent=11 // pred_check
          %p237 = pneg %p174
        $region30: #{tpu_custom_call.1} parent=11 // pred_check_branch
          %239 = sbr.rel (%p237) target = $region32
        $region31: #{tpu_custom_call.1} parent=11 // pred_region
          _
        $region32: #{tpu_custom_call.1} parent=11 // pred_fallthru
          _
      $region12: #{tpu_custom_call.1} parent=5 // pred_fallthru
        _
      %p240 = scmp.lt.s32.totalorder %s17, 2
      // Predicated region
      $region33: #{tpu_custom_call.1} parent=5 // pred_check
        %p241 = pneg %p240
      $region34: #{tpu_custom_call.1} parent=5 // pred_check_branch
        %243 = sbr.rel (%p241) target = $region36
      $region35: #{tpu_custom_call.1} parent=5 // pred_region
        // Predicated region
        $region37: #{tpu_custom_call.1} parent=35 // pred_check
          %p244 = pneg %p37
        $region38: #{tpu_custom_call.1} parent=35 // pred_check_branch
          %246 = sbr.rel (%p244) target = $region40
        $region39: #{tpu_custom_call.1} parent=35 // pred_region
          %s247 = smul.u32 4, %s17
          %p248 = scmp.lt.s32.totalorder %s247, 7
          %s249 = scalar_select %p248, %s247, 7
          %s250 = scalar_lea.vmem %s0, %s249
          %s251 = smul.u32 4, %s17
        $region40: #{tpu_custom_call.1} parent=35 // pred_fallthru
          _
        // Predicated region
        $region41: #{tpu_custom_call.1} parent=35 // pred_check
          %p252 = pneg %p63
        $region42: #{tpu_custom_call.1} parent=35 // pred_check_branch
          %254 = sbr.rel (%p252) target = $region44
        $region43: #{tpu_custom_call.1} parent=35 // pred_region
          %s255 = smul.u32 4, %s17
          %p256 = scmp.lt.s32.totalorder %s255, 7
          %s257 = scalar_select %p256, %s255, 7
          %s258 = smul.addr %s257, 2
          %s259 = smul.addr %s258, 4
          %s260 = scalar_lea.vmem %s1, %s259
          %s261 = smul.u32 4, %s17
        $region44: #{tpu_custom_call.1} parent=35 // pred_fallthru
          _
      $region36: #{tpu_custom_call.1} parent=5 // pred_fallthru
        _
      %p262 = scmp.le.s32.totalorder 1, %s17
      %p263 = scmp.lt.s32.totalorder %s17, 3
      %p264 = pnand %p262, %p263
      %p265 = pneg %p264
      // Predicated region
      $region45: #{tpu_custom_call.1} parent=5 // pred_check
        _
      $region46: #{tpu_custom_call.1} parent=5 // pred_check_branch
        %267 = sbr.rel (%p264) target = $region48
      $region47: #{tpu_custom_call.1} parent=5 // pred_region
        %s268 = ssub.s32 %s17, 1
        // Predicated region
        $region49: #{tpu_custom_call.1} parent=47 // pred_check
          %p269 = pneg %p132
        $region50: #{tpu_custom_call.1} parent=47 // pred_check_branch
          %271 = sbr.rel (%p269) target = $region52
        $region51: #{tpu_custom_call.1} parent=47 // pred_region
          %272 = dma.done [#allocation3], 5120
        $region52: #{tpu_custom_call.1} parent=47 // pred_fallthru
          _
        %s273 = smul.u32 4, %s22
        %p274 = scmp.lt.s32.totalorder %s273, 7
        %s275 = scalar_select %p274, %s273, 7
        %s276 = scalar_lea.vmem %s0, %s275
        %p277 = pneg %p43
        %p278 = pneg %p40
        %s279 = smul.u32 4, %s22
        %p280 = scmp.lt.s32.totalorder %s279, 7
        %s281 = scalar_select %p280, %s279, 7
        %s282 = smul.addr %s281, 2
        %s283 = smul.addr %s282, 4
        %s284 = scalar_lea.vmem %s1, %s283
        %p285 = pneg %p69
        %p286 = pneg %p66
        %p287 = pneg %p90
        %p288 = pneg %p87
        %p289 = pneg %p111
        %p290 = pneg %p108
        %p291 = pneg %p132
        %p292 = pneg %p129
        %p293 = pneg %p153
        %p294 = pneg %p150
        %p295 = pneg %p174
        %p296 = pneg %p171
        %p297 = pneg %p200
        %p298 = pneg %p197
        %s299 = sand.u32 %s187, 1
        %s300 = scalar_lea.sflag [#allocation4], %s299
        %s301 = sand.u32 %s187, 1
        %s302 = smul.addr %s301, 32
        %s303 = scalar_lea.vmem [#allocation5], %s302
        %s304 = smul.u32 4, %s22
        %p305 = scmp.lt.s32.totalorder %s304, 7
        %s306 = scalar_select %p305, %s304, 7
        %s307 = scalar_lea.vmem %s0, %s306
        %s308 = smul.u32 4, %s22
        %s309 = smul.u32 4, %s22
        %p310 = scmp.lt.s32.totalorder %s309, 7
        %s311 = scalar_select %p310, %s309, 7
        %s312 = smul.addr %s311, 2
        %s313 = smul.addr %s312, 4
        %s314 = scalar_lea.vmem %s1, %s313
        %s315 = smul.u32 4, %s22
        %s316 = smul.u32 4, %s22
        %v318 = vld [vmem:[%s5] sm:$0x3f]
        %v319 = vld [vmem:[%s307] sm:$0x1]
        %v320 = vld [vmem:[%s307 + $0x1] sm:$0x1]
        %v321 = vld [vmem:[%s307 + $0x2] sm:$0x1]
        %v322 = vld [vmem:[%s307 + $0x3] sm:$0x1]
        %v323 = vld [vmem:[%s2] sm:$0xf]
        %v324 = vld [vmem:[%s2 + $0x4] sm:$0xf]
        %v325 = vld [vmem:[%s2 + $0x8] sm:$0xf]
        %v326 = vld [vmem:[%s2 + $0xc] sm:$0xf]
        %v327 = vlaneseq
        %v328 = vshrl.u32 %v327, 7
        %v329 = vsub.s32 0, %v328
        %v330 = vrot.slane %v318, %v329
        %v335 = vcombine.low %v319, %v320
        %v336 = vcombine.low %v321, %v322
        %v338 = vunpack.c.l.s4 1966171168
        %v339 = vunpack.c.0.s8 %v338
        %v340 = vlaneseq
        %v341 = vshrl.u32 %v340, 7
        %v342 = vsub.s32 %v339, %v341
        %v343 = vrot.slane %v335, %v342
        %v345 = vunpack.c.l.s4 1966171168
        %v346 = vunpack.c.0.s8 %v345
        %v347 = vlaneseq
        %v348 = vshrl.u32 %v347, 7
        %v349 = vsub.s32 %v346, %v348
        %v350 = vrot.slane %v336, %v349
        %v351 = vcombine.low %v343, %v350
        %v353 = vunpack.c.l.s4 1966171168
        %v354 = vunpack.c.0.s8 %v353
        %v355 = vlaneseq
        %v356 = vshrl.u32 %v355, 7
        %v357 = vsub.s32 %v354, %v356
        %v358 = vrot.slane %v351, %v357
        %v363 = vunpack.c.l.b16 %v323
        %v364 = vunpack.c.l.b16 %v324
        %v365 = vunpack.c.l.b16 %v325
        %v366 = vunpack.c.l.b16 %v326
        %v367 = vpack.c.b16 %v364, %v363
        %v368 = vpack.c.b16 %v366, %v365
        %vm371 = vcmask 261120
        %v373 = vsel %vm371, %v358, 0
        %375 = vmatprep.subr.bf16.mxu0 0
        %376 = vmatpush1.bf16.msra.mxu0 0
        %377 = vmatprep.subr.bf16.mxu0 0
        %378 = vmatpush1.bf16.msra.mxu0 0
        %379 = vmatprep.subr.bf16.mxu0 0
        %380 = vmatpush1.bf16.msra.mxu0 0
        %381 = vmatprep.subr.bf16.mxu0 0
        %382 = vmatpush1.bf16.msra.mxu0 0
        %383 = vmatprep.subr.bf16.mxu0 0
        %384 = vmatpush1.bf16.msra.mxu0 0
        %385 = vmatprep.subr.bf16.mxu0 0
        %386 = vmatpush1.bf16.msra.mxu0 0
        %387 = vmatprep.subr.bf16.mxu0 0
        %388 = vmatpush1.bf16.msra.mxu0 %v368
        %389 = vmatprep.subr.bf16.mxu0 0
        %390 = vmatpush1.bf16.msra.mxu0 %v367
        %391 = vmatprep.subr.bf16.mxu0 0
        %392 = vmatpush2.bf16.msra.mxu0 0
        %393 = vmatprep.subr.bf16.mxu0 0
        %394 = vmatpush2.bf16.msra.mxu0 0
        %395 = vmatprep.subr.bf16.mxu0 0
        %396 = vmatpush2.bf16.msra.mxu0 0
        %397 = vmatprep.subr.bf16.mxu0 0
        %398 = vmatpush2.bf16.msra.mxu0 0
        %399 = vmatprep.subr.bf16.mxu0 0
        %400 = vmatpush2.bf16.msra.mxu0 0
        %401 = vmatprep.subr.bf16.mxu0 0
        %402 = vmatpush2.bf16.msra.mxu0 0
        %403 = vmatprep.subr.bf16.mxu0 0
        %404 = vmatpush2.bf16.msra.mxu0 0
        %405 = vmatprep.subr.bf16.mxu0 0
        %406 = vmatpush2.bf16.msra.mxu0 0
        %407 = vmatprep.mubr.bf16.mxu0 0
        %408 = vmatmul.mubr.bf16.gmra.mxu0 %v373
        %v409 = vpop.f32.mrf.mxu0
        %v410 = vadd.f32 %v330, %v409
        %v411 = vpop.f32.mrf.mxu0
        %v412 = vpop.f32.mrf.mxu0
        %v413 = vpop.f32.mrf.mxu0
        %414 = vdwg.mxu0
        %v415 = vmax.f32 %v410, 0.0
        %v416 = vpack.c.bf16 %v415, %v415
        %s417 = scalar_lea.vmem [#allocation2], 64
        %v418 = vld [vmem:[%s417] sm:$0xf]
        %v419 = vld [vmem:[%s417 + $0x4] sm:$0xf]
        %v420 = vld [vmem:[%s417 + $0x8] sm:$0xf]
        %v421 = vld [vmem:[%s417 + $0xc] sm:$0xf]
        %v422 = vld [vmem:[%s417 + $0x10] sm:$0xf]
        %v423 = vld [vmem:[%s417 + $0x14] sm:$0xf]
        %v424 = vld [vmem:[%s417 + $0x18] sm:$0xf]
        %v425 = vld [vmem:[%s417 + $0x1c] sm:$0xf]
        %v426 = vld [vmem:[%s417 + $0x20] sm:$0xf]
        %v427 = vld [vmem:[%s417 + $0x24] sm:$0xf]
        %v428 = vld [vmem:[%s417 + $0x28] sm:$0xf]
        %v429 = vld [vmem:[%s417 + $0x2c] sm:$0xf]
        %v430 = vld [vmem:[%s417 + $0x30] sm:$0xf]
        %v431 = vld [vmem:[%s417 + $0x34] sm:$0xf]
        %v432 = vld [vmem:[%s417 + $0x38] sm:$0xf]
        %v433 = vld [vmem:[%s417 + $0x3c] sm:$0xf]
        %v434 = vlaneseq
        %v435 = vshrl.u32 %v434, 7
        %v436 = vsub.s32 1, %v435
        %v437 = vrot.slane %v318, %v436
        %v454 = vunpack.c.l.b16 %v418
        %v455 = vunpack.c.l.b16 %v419
        %v456 = vunpack.c.l.b16 %v420
        %v457 = vunpack.c.l.b16 %v421
        %v458 = vunpack.c.l.b16 %v422
        %v459 = vunpack.c.l.b16 %v423
        %v460 = vunpack.c.l.b16 %v424
        %v461 = vunpack.c.l.b16 %v425
        %v462 = vunpack.c.l.b16 %v426
        %v463 = vunpack.c.l.b16 %v427
        %v464 = vunpack.c.l.b16 %v428
        %v465 = vunpack.c.l.b16 %v429
        %v466 = vunpack.c.l.b16 %v430
        %v467 = vunpack.c.l.b16 %v431
        %v468 = vunpack.c.l.b16 %v432
        %v469 = vunpack.c.l.b16 %v433
        %v470 = vpack.c.b16 %v455, %v454
        %v471 = vpack.c.b16 %v457, %v456
        %v472 = vpack.c.b16 %v459, %v458
        %v473 = vpack.c.b16 %v461, %v460
        %v474 = vpack.c.b16 %v463, %v462
        %v475 = vpack.c.b16 %v465, %v464
        %v476 = vpack.c.b16 %v467, %v466
        %v477 = vpack.c.b16 %v469, %v468
        %486 = vmatprep.subr.bf16.mxu0 0
        %487 = vmatpush1.bf16.msra.mxu0 %v477
        %488 = vmatprep.subr.bf16.mxu0 0
        %489 = vmatpush1.bf16.msra.mxu0 %v476
        %490 = vmatprep.subr.bf16.mxu0 0
        %491 = vmatpush1.bf16.msra.mxu0 %v475
        %492 = vmatprep.subr.bf16.mxu0 0
        %493 = vmatpush1.bf16.msra.mxu0 %v474
        %494 = vmatprep.subr.bf16.mxu0 0
        %495 = vmatpush1.bf16.msra.mxu0 %v473
        %496 = vmatprep.subr.bf16.mxu0 0
        %497 = vmatpush1.bf16.msra.mxu0 %v472
        %498 = vmatprep.subr.bf16.mxu0 0
        %499 = vmatpush1.bf16.msra.mxu0 %v471
        %500 = vmatprep.subr.bf16.mxu0 0
        %501 = vmatpush1.bf16.msra.mxu0 %v470
        %502 = vmatprep.subr.bf16.mxu0 0
        %503 = vmatpush2.bf16.msra.mxu0 0
        %504 = vmatprep.subr.bf16.mxu0 0
        %505 = vmatpush2.bf16.msra.mxu0 0
        %506 = vmatprep.subr.bf16.mxu0 0
        %507 = vmatpush2.bf16.msra.mxu0 0
        %508 = vmatprep.subr.bf16.mxu0 0
        %509 = vmatpush2.bf16.msra.mxu0 0
        %510 = vmatprep.subr.bf16.mxu0 0
        %511 = vmatpush2.bf16.msra.mxu0 0
        %512 = vmatprep.subr.bf16.mxu0 0
        %513 = vmatpush2.bf16.msra.mxu0 0
        %514 = vmatprep.subr.bf16.mxu0 0
        %515 = vmatpush2.bf16.msra.mxu0 0
        %516 = vmatprep.subr.bf16.mxu0 0
        %517 = vmatpush2.bf16.msra.mxu0 0
        %518 = vmatprep.mubr.bf16.mxu0 0
        %519 = vmatmul.mubr.bf16.gmra.mxu0 %v416
        %v520 = vpop.f32.mrf.mxu0
        %v521 = vadd.f32 %v437, %v520
        %v522 = vpop.f32.mrf.mxu0
        %v523 = vpop.f32.mrf.mxu0
        %v524 = vpop.f32.mrf.mxu0
        %525 = vdwg.mxu0
        %v526 = vmax.f32 %v521, 0.0
        %v527 = vpack.c.bf16 %v526, %v526
        %v528 = vld [vmem:[%s3] sm:$0xf]
        %v529 = vld [vmem:[%s3 + $0x4] sm:$0xf]
        %v530 = vld [vmem:[%s3 + $0x8] sm:$0xf]
        %v531 = vld [vmem:[%s3 + $0xc] sm:$0xf]
        %v532 = vld [vmem:[%s3 + $0x10] sm:$0xf]
        %v533 = vld [vmem:[%s3 + $0x14] sm:$0xf]
        %v534 = vld [vmem:[%s3 + $0x18] sm:$0xf]
        %v535 = vld [vmem:[%s3 + $0x1c] sm:$0xf]
        %v536 = vld [vmem:[%s3 + $0x20] sm:$0xf]
        %v537 = vld [vmem:[%s3 + $0x24] sm:$0xf]
        %v538 = vld [vmem:[%s3 + $0x28] sm:$0xf]
        %v539 = vld [vmem:[%s3 + $0x2c] sm:$0xf]
        %v540 = vld [vmem:[%s3 + $0x30] sm:$0xf]
        %v541 = vld [vmem:[%s3 + $0x34] sm:$0xf]
        %v542 = vld [vmem:[%s3 + $0x38] sm:$0xf]
        %v543 = vld [vmem:[%s3 + $0x3c] sm:$0xf]
        %v544 = vld [vmem:[%s6] sm:$0x1]
        %v546 = vlaneseq
        %v547 = vshrl.u32 %v546, 7
        %v548 = vsub.s32 0, %v547
        %v549 = vrot.slane %v544, %v548
        %v567 = vunpack.c.l.b16 %v528
        %v568 = vunpack.c.l.b16 %v529
        %v569 = vunpack.c.l.b16 %v530
        %v570 = vunpack.c.l.b16 %v531
        %v571 = vunpack.c.l.b16 %v532
        %v572 = vunpack.c.l.b16 %v533
        %v573 = vunpack.c.l.b16 %v534
        %v574 = vunpack.c.l.b16 %v535
        %v575 = vunpack.c.l.b16 %v536
        %v576 = vunpack.c.l.b16 %v537
        %v577 = vunpack.c.l.b16 %v538
        %v578 = vunpack.c.l.b16 %v539
        %v579 = vunpack.c.l.b16 %v540
        %v580 = vunpack.c.l.b16 %v541
        %v581 = vunpack.c.l.b16 %v542
        %v582 = vunpack.c.l.b16 %v543
        %v583 = vpack.c.b16 %v568, %v567
        %v584 = vpack.c.b16 %v570, %v569
        %v585 = vpack.c.b16 %v572, %v571
        %v586 = vpack.c.b16 %v574, %v573
        %v587 = vpack.c.b16 %v576, %v575
        %v588 = vpack.c.b16 %v578, %v577
        %v589 = vpack.c.b16 %v580, %v579
        %v590 = vpack.c.b16 %v582, %v581
        %599 = vmatprep.subr.bf16.mxu0 0
        %600 = vmatpush1.bf16.msra.mxu0 %v590
        %601 = vmatprep.subr.bf16.mxu0 0
        %602 = vmatpush1.bf16.msra.mxu0 %v589
        %603 = vmatprep.subr.bf16.mxu0 0
        %604 = vmatpush1.bf16.msra.mxu0 %v588
        %605 = vmatprep.subr.bf16.mxu0 0
        %606 = vmatpush1.bf16.msra.mxu0 %v587
        %607 = vmatprep.subr.bf16.mxu0 0
        %608 = vmatpush1.bf16.msra.mxu0 %v586
        %609 = vmatprep.subr.bf16.mxu0 0
        %610 = vmatpush1.bf16.msra.mxu0 %v585
        %611 = vmatprep.subr.bf16.mxu0 0
        %612 = vmatpush1.bf16.msra.mxu0 %v584
        %613 = vmatprep.subr.bf16.mxu0 0
        %614 = vmatpush1.bf16.msra.mxu0 %v583
        %615 = vmatprep.subr.bf16.mxu0 0
        %616 = vmatpush2.bf16.msra.mxu0 0
        %617 = vmatprep.subr.bf16.mxu0 0
        %618 = vmatpush2.bf16.msra.mxu0 0
        %619 = vmatprep.subr.bf16.mxu0 0
        %620 = vmatpush2.bf16.msra.mxu0 0
        %621 = vmatprep.subr.bf16.mxu0 0
        %622 = vmatpush2.bf16.msra.mxu0 0
        %623 = vmatprep.subr.bf16.mxu0 0
        %624 = vmatpush2.bf16.msra.mxu0 0
        %625 = vmatprep.subr.bf16.mxu0 0
        %626 = vmatpush2.bf16.msra.mxu0 0
        %627 = vmatprep.subr.bf16.mxu0 0
        %628 = vmatpush2.bf16.msra.mxu0 0
        %629 = vmatprep.subr.bf16.mxu0 0
        %630 = vmatpush2.bf16.msra.mxu0 0
        %631 = vmatprep.mubr.bf16.mxu0 0
        %632 = vmatmul.mubr.bf16.gmra.mxu0 %v527
        %v633 = vpop.f32.mrf.mxu0
        %v634 = vadd.f32 %v549, %v633
        %v635 = vpop.f32.mrf.mxu0
        %v636 = vpop.f32.mrf.mxu0
        %v637 = vpop.f32.mrf.mxu0
        %638 = vdwg.mxu0
        %v639 = vmax.f32 %v634, 0.0
        %v640 = vld [vmem:[#allocation2] sm:$0xf]
        %v641 = vld [vmem:[#allocation2 + $0x4] sm:$0xf]
        %v642 = vld [vmem:[#allocation2 + $0x8] sm:$0xf]
        %v643 = vld [vmem:[#allocation2 + $0xc] sm:$0xf]
        %v644 = vld [vmem:[#allocation2 + $0x10] sm:$0xf]
        %v645 = vld [vmem:[#allocation2 + $0x14] sm:$0xf]
        %v646 = vld [vmem:[#allocation2 + $0x18] sm:$0xf]
        %v647 = vld [vmem:[#allocation2 + $0x1c] sm:$0xf]
        %v648 = vld [vmem:[#allocation2 + $0x20] sm:$0xf]
        %v649 = vld [vmem:[#allocation2 + $0x24] sm:$0xf]
        %v650 = vld [vmem:[#allocation2 + $0x28] sm:$0xf]
        %v651 = vld [vmem:[#allocation2 + $0x2c] sm:$0xf]
        %v652 = vld [vmem:[#allocation2 + $0x30] sm:$0xf]
        %v653 = vld [vmem:[#allocation2 + $0x34] sm:$0xf]
        %v654 = vld [vmem:[#allocation2 + $0x38] sm:$0xf]
        %v655 = vld [vmem:[#allocation2 + $0x3c] sm:$0xf]
        %v656 = vpack.c.bf16 %v639, %v639
        %v665 = vunpack.c.l.b16 %v640
        %v666 = vunpack.c.l.b16 %v641
        %v667 = vunpack.c.l.b16 %v642
        %v668 = vunpack.c.l.b16 %v643
        %v669 = vunpack.c.l.b16 %v644
        %v670 = vunpack.c.l.b16 %v645
        %v671 = vunpack.c.l.b16 %v646
        %v672 = vunpack.c.l.b16 %v647
        %v673 = vpack.c.b16 %v666, %v665
        %v674 = vpack.c.b16 %v668, %v667
        %v675 = vpack.c.b16 %v670, %v669
        %v676 = vpack.c.b16 %v672, %v671
        %vm681 = vcmask 523264
        %v683 = vsel %vm681, %v656, 0
        %685 = vmatprep.subr.bf16.mxu0 0
        %686 = vmatpush1.bf16.msra.mxu0 0
        %687 = vmatprep.subr.bf16.mxu0 0
        %688 = vmatpush1.bf16.msra.mxu0 0
        %689 = vmatprep.subr.bf16.mxu0 0
        %690 = vmatpush1.bf16.msra.mxu0 0
        %691 = vmatprep.subr.bf16.mxu0 0
        %692 = vmatpush1.bf16.msra.mxu0 0
        %693 = vmatprep.subr.bf16.mxu0 0
        %694 = vmatpush1.bf16.msra.mxu0 %v676
        %695 = vmatprep.subr.bf16.mxu0 0
        %696 = vmatpush1.bf16.msra.mxu0 %v675
        %697 = vmatprep.subr.bf16.mxu0 0
        %698 = vmatpush1.bf16.msra.mxu0 %v674
        %699 = vmatprep.subr.bf16.mxu0 0
        %700 = vmatpush1.bf16.msra.mxu0 %v673
        %701 = vmatprep.subr.bf16.mxu0 0
        %702 = vmatpush2.bf16.msra.mxu0 0
        %703 = vmatprep.subr.bf16.mxu0 0
        %704 = vmatpush2.bf16.msra.mxu0 0
        %705 = vmatprep.subr.bf16.mxu0 0
        %706 = vmatpush2.bf16.msra.mxu0 0
        %707 = vmatprep.subr.bf16.mxu0 0
        %708 = vmatpush2.bf16.msra.mxu0 0
        %709 = vmatprep.subr.bf16.mxu0 0
        %710 = vmatpush2.bf16.msra.mxu0 0
        %711 = vmatprep.subr.bf16.mxu0 0
        %712 = vmatpush2.bf16.msra.mxu0 0
        %713 = vmatprep.subr.bf16.mxu0 0
        %714 = vmatpush2.bf16.msra.mxu0 0
        %715 = vmatprep.subr.bf16.mxu0 0
        %716 = vmatpush2.bf16.msra.mxu0 0
        %717 = vmatprep.mubr.bf16.mxu0 0
        %718 = vmatmul.mubr.bf16.gmra.mxu0 %v683
        %v719 = vpop.f32.mrf.mxu0
        %v720 = vadd.f32 0.0, %v719
        %v721 = vpop.f32.mrf.mxu0
        %v722 = vpop.f32.mrf.mxu0
        %v723 = vpop.f32.mrf.mxu0
        %724 = vdwg.mxu0
        %v725 = vld [vmem:[%s314] sm:$0xf]
        %v726 = vld [vmem:[%s314 + $0x4] sm:$0xf]
        %v727 = vld [vmem:[%s314 + $0x8] sm:$0xf]
        %v728 = vld [vmem:[%s314 + $0xc] sm:$0xf]
        %v729 = vld [vmem:[%s314 + $0x10] sm:$0xf]
        %v730 = vld [vmem:[%s314 + $0x14] sm:$0xf]
        %v731 = vld [vmem:[%s314 + $0x18] sm:$0xf]
        %v732 = vld [vmem:[%s314 + $0x1c] sm:$0xf]
        %v741 = vunpack.c.l.b16 %v725
        %v742 = vunpack.c.l.b16 %v726
        %v743 = vunpack.c.l.b16 %v727
        %v744 = vunpack.c.l.b16 %v728
        %v745 = vunpack.c.l.b16 %v729
        %v746 = vunpack.c.l.b16 %v730
        %v747 = vunpack.c.l.b16 %v731
        %v748 = vunpack.c.l.b16 %v732
        %v749 = vpack.c.b16 %v742, %v741
        %v750 = vpack.c.b16 %v744, %v743
        %v751 = vpack.c.b16 %v746, %v745
        %v752 = vpack.c.b16 %v748, %v747
        %v761 = vunpack.c.l.b16 %v648
        %v762 = vunpack.c.l.b16 %v649
        %v763 = vunpack.c.l.b16 %v650
        %v764 = vunpack.c.l.b16 %v651
        %v765 = vunpack.c.l.b16 %v652
        %v766 = vunpack.c.l.b16 %v653
        %v767 = vunpack.c.l.b16 %v654
        %v768 = vunpack.c.l.b16 %v655
        %v769 = vpack.c.b16 %v762, %v761
        %v770 = vpack.c.b16 %v764, %v763
        %v771 = vpack.c.b16 %v766, %v765
        %v772 = vpack.c.b16 %v768, %v767
        %v778 = vsel %vm681, %v749, 0
        %v781 = vsel %vm681, %v750, 0
        %v784 = vsel %vm681, %v751, 0
        %v787 = vsel %vm681, %v752, 0
        %789 = vmatprep.subr.bf16.mxu0 0
        %790 = vmatpush1.bf16.msra.mxu0 0
        %791 = vmatprep.subr.bf16.mxu0 0
        %792 = vmatpush1.bf16.msra.mxu0 0
        %793 = vmatprep.subr.bf16.mxu0 0
        %794 = vmatpush1.bf16.msra.mxu0 0
        %795 = vmatprep.subr.bf16.mxu0 0
        %796 = vmatpush1.bf16.msra.mxu0 0
        %797 = vmatprep.subr.bf16.mxu0 0
        %798 = vmatpush1.bf16.msra.mxu0 %v772
        %799 = vmatprep.subr.bf16.mxu0 0
        %800 = vmatpush1.bf16.msra.mxu0 %v771
        %801 = vmatprep.subr.bf16.mxu0 0
        %802 = vmatpush1.bf16.msra.mxu0 %v770
        %803 = vmatprep.subr.bf16.mxu0 0
        %804 = vmatpush1.bf16.msra.mxu0 %v769
        %805 = vmatprep.subr.bf16.mxu0 0
        %806 = vmatpush2.bf16.msra.mxu0 0
        %807 = vmatprep.subr.bf16.mxu0 0
        %808 = vmatpush2.bf16.msra.mxu0 0
        %809 = vmatprep.subr.bf16.mxu0 0
        %810 = vmatpush2.bf16.msra.mxu0 0
        %811 = vmatprep.subr.bf16.mxu0 0
        %812 = vmatpush2.bf16.msra.mxu0 0
        %813 = vmatprep.subr.bf16.mxu0 0
        %814 = vmatpush2.bf16.msra.mxu0 0
        %815 = vmatprep.subr.bf16.mxu0 0
        %816 = vmatpush2.bf16.msra.mxu0 0
        %817 = vmatprep.subr.bf16.mxu0 0
        %818 = vmatpush2.bf16.msra.mxu0 0
        %819 = vmatprep.subr.bf16.mxu0 0
        %820 = vmatpush2.bf16.msra.mxu0 0
        %821 = vmatprep.mubr.bf16.mxu0 0
        %822 = vmatmul.mubr.bf16.gmra.mxu0 %v778
        %v823 = vpop.f32.mrf.mxu0
        %v824 = vadd.f32 0.0, %v823
        %v825 = vpop.f32.mrf.mxu0
        %v826 = vpop.f32.mrf.mxu0
        %v827 = vadd.f32 0.0, %v826
        %v828 = vpop.f32.mrf.mxu0
        %829 = vmatprep.mubr.bf16.mxu0 0
        %830 = vmatmul.mubr.bf16.gmra.mxu0 %v781
        %v831 = vpop.f32.mrf.mxu0
        %v832 = vadd.f32 0.0, %v831
        %v833 = vpop.f32.mrf.mxu0
        %v834 = vpop.f32.mrf.mxu0
        %v835 = vadd.f32 0.0, %v834
        %v836 = vpop.f32.mrf.mxu0
        %837 = vmatprep.mubr.bf16.mxu0 0
        %838 = vmatmul.mubr.bf16.gmra.mxu0 %v784
        %v839 = vpop.f32.mrf.mxu0
        %v840 = vadd.f32 0.0, %v839
        %v841 = vpop.f32.mrf.mxu0
        %v842 = vpop.f32.mrf.mxu0
        %v843 = vadd.f32 0.0, %v842
        %v844 = vpop.f32.mrf.mxu0
        %845 = vmatprep.mubr.bf16.mxu0 0
        %846 = vmatmul.mubr.bf16.gmra.mxu0 %v787
        %v847 = vpop.f32.mrf.mxu0
        %v848 = vadd.f32 0.0, %v847
        %v849 = vpop.f32.mrf.mxu0
        %v850 = vpop.f32.mrf.mxu0
        %v851 = vadd.f32 0.0, %v850
        %v852 = vpop.f32.mrf.mxu0
        %853 = vdwg.mxu0
        %v862 = vcombine.high %v824, %v824
        %v864 = vunpack.c.l.s4 1983009808
        %v865 = vunpack.c.0.s8 %v864
        %v866 = vlaneseq
        %v867 = vshrl.u32 %v866, 7
        %v868 = vsub.s32 %v865, %v867
        %v869 = vrot.slane %v824, %v868
        %v871 = vunpack.c.l.s4 1983009808
        %v872 = vunpack.c.0.s8 %v871
        %v873 = vlaneseq
        %v874 = vshrl.u32 %v873, 7
        %v875 = vsub.s32 %v872, %v874
        %v876 = vrot.slane %v862, %v875
        %v877 = vcombine.high %v869, %v869
        %v878 = vcombine.high %v876, %v876
        %v879 = vcombine.high %v827, %v827
        %v881 = vunpack.c.l.s4 1983009808
        %v882 = vunpack.c.0.s8 %v881
        %v883 = vlaneseq
        %v884 = vshrl.u32 %v883, 7
        %v885 = vsub.s32 %v882, %v884
        %v886 = vrot.slane %v827, %v885
        %v888 = vunpack.c.l.s4 1983009808
        %v889 = vunpack.c.0.s8 %v888
        %v890 = vlaneseq
        %v891 = vshrl.u32 %v890, 7
        %v892 = vsub.s32 %v889, %v891
        %v893 = vrot.slane %v879, %v892
        %v894 = vcombine.high %v886, %v886
        %v895 = vcombine.high %v893, %v893
        %v896 = vcombine.high %v832, %v832
        %v898 = vunpack.c.l.s4 1983009808
        %v899 = vunpack.c.0.s8 %v898
        %v900 = vlaneseq
        %v901 = vshrl.u32 %v900, 7
        %v902 = vsub.s32 %v899, %v901
        %v903 = vrot.slane %v832, %v902
        %v905 = vunpack.c.l.s4 1983009808
        %v906 = vunpack.c.0.s8 %v905
        %v907 = vlaneseq
        %v908 = vshrl.u32 %v907, 7
        %v909 = vsub.s32 %v906, %v908
        %v910 = vrot.slane %v896, %v909
        %v911 = vcombine.high %v903, %v903
        %v912 = vcombine.high %v910, %v910
        %v913 = vcombine.high %v835, %v835
        %v915 = vunpack.c.l.s4 1983009808
        %v916 = vunpack.c.0.s8 %v915
        %v917 = vlaneseq
        %v918 = vshrl.u32 %v917, 7
        %v919 = vsub.s32 %v916, %v918
        %v920 = vrot.slane %v835, %v919
        %v922 = vunpack.c.l.s4 1983009808
        %v923 = vunpack.c.0.s8 %v922
        %v924 = vlaneseq
        %v925 = vshrl.u32 %v924, 7
        %v926 = vsub.s32 %v923, %v925
        %v927 = vrot.slane %v913, %v926
        %v928 = vcombine.high %v920, %v920
        %v929 = vcombine.high %v927, %v927
        %v930 = vcombine.high %v840, %v840
        %v932 = vunpack.c.l.s4 1983009808
        %v933 = vunpack.c.0.s8 %v932
        %v934 = vlaneseq
        %v935 = vshrl.u32 %v934, 7
        %v936 = vsub.s32 %v933, %v935
        %v937 = vrot.slane %v840, %v936
        %v939 = vunpack.c.l.s4 1983009808
        %v940 = vunpack.c.0.s8 %v939
        %v941 = vlaneseq
        %v942 = vshrl.u32 %v941, 7
        %v943 = vsub.s32 %v940, %v942
        %v944 = vrot.slane %v930, %v943
        %v945 = vcombine.high %v937, %v937
        %v946 = vcombine.high %v944, %v944
        %v947 = vcombine.high %v843, %v843
        %v949 = vunpack.c.l.s4 1983009808
        %v950 = vunpack.c.0.s8 %v949
        %v951 = vlaneseq
        %v952 = vshrl.u32 %v951, 7
        %v953 = vsub.s32 %v950, %v952
        %v954 = vrot.slane %v843, %v953
        %v956 = vunpack.c.l.s4 1983009808
        %v957 = vunpack.c.0.s8 %v956
        %v958 = vlaneseq
        %v959 = vshrl.u32 %v958, 7
        %v960 = vsub.s32 %v957, %v959
        %v961 = vrot.slane %v947, %v960
        %v962 = vcombine.high %v954, %v954
        %v963 = vcombine.high %v961, %v961
        %v964 = vcombine.high %v848, %v848
        %v966 = vunpack.c.l.s4 1983009808
        %v967 = vunpack.c.0.s8 %v966
        %v968 = vlaneseq
        %v969 = vshrl.u32 %v968, 7
        %v970 = vsub.s32 %v967, %v969
        %v971 = vrot.slane %v848, %v970
        %v973 = vunpack.c.l.s4 1983009808
        %v974 = vunpack.c.0.s8 %v973
        %v975 = vlaneseq
        %v976 = vshrl.u32 %v975, 7
        %v977 = vsub.s32 %v974, %v976
        %v978 = vrot.slane %v964, %v977
        %v979 = vcombine.high %v971, %v971
        %v980 = vcombine.high %v978, %v978
        %v981 = vcombine.high %v851, %v851
        %v983 = vunpack.c.l.s4 1983009808
        %v984 = vunpack.c.0.s8 %v983
        %v985 = vlaneseq
        %v986 = vshrl.u32 %v985, 7
        %v987 = vsub.s32 %v984, %v986
        %v988 = vrot.slane %v851, %v987
        %v990 = vunpack.c.l.s4 1983009808
        %v991 = vunpack.c.0.s8 %v990
        %v992 = vlaneseq
        %v993 = vshrl.u32 %v992, 7
        %v994 = vsub.s32 %v991, %v993
        %v995 = vrot.slane %v981, %v994
        %v996 = vcombine.high %v988, %v988
        %v997 = vcombine.high %v995, %v995
        %v1031 = vcombine.high %v720, %v720
        %v1033 = vunpack.c.l.s4 1983009808
        %v1034 = vunpack.c.0.s8 %v1033
        %v1035 = vlaneseq
        %v1036 = vshrl.u32 %v1035, 7
        %v1037 = vsub.s32 %v1034, %v1036
        %v1038 = vrot.slane %v720, %v1037
        %v1040 = vunpack.c.l.s4 1983009808
        %v1041 = vunpack.c.0.s8 %v1040
        %v1042 = vlaneseq
        %v1043 = vshrl.u32 %v1042, 7
        %v1044 = vsub.s32 %v1041, %v1043
        %v1045 = vrot.slane %v1031, %v1044
        %v1046 = vcombine.high %v1038, %v1038
        %v1047 = vcombine.high %v1045, %v1045
        %v1052 = vadd.f32 %v869, %v1038
        %v1053 = vadd.f32 %v877, %v1038
        %v1054 = vadd.f32 %v876, %v1038
        %v1055 = vadd.f32 %v878, %v1038
        %v1056 = vadd.f32 %v886, %v1038
        %v1057 = vadd.f32 %v894, %v1038
        %v1058 = vadd.f32 %v893, %v1038
        %v1059 = vadd.f32 %v895, %v1038
        %v1060 = vadd.f32 %v903, %v1046
        %v1061 = vadd.f32 %v911, %v1046
        %v1062 = vadd.f32 %v910, %v1046
        %v1063 = vadd.f32 %v912, %v1046
        %v1064 = vadd.f32 %v920, %v1046
        %v1065 = vadd.f32 %v928, %v1046
        %v1066 = vadd.f32 %v927, %v1046
        %v1067 = vadd.f32 %v929, %v1046
        %v1068 = vadd.f32 %v937, %v1045
        %v1069 = vadd.f32 %v945, %v1045
        %v1070 = vadd.f32 %v944, %v1045
        %v1071 = vadd.f32 %v946, %v1045
        %v1072 = vadd.f32 %v954, %v1045
        %v1073 = vadd.f32 %v962, %v1045
        %v1074 = vadd.f32 %v961, %v1045
        %v1075 = vadd.f32 %v963, %v1045
        %v1076 = vadd.f32 %v971, %v1047
        %v1077 = vadd.f32 %v979, %v1047
        %v1078 = vadd.f32 %v978, %v1047
        %v1079 = vadd.f32 %v980, %v1047
        %v1080 = vadd.f32 %v988, %v1047
        %v1081 = vadd.f32 %v996, %v1047
        %v1082 = vadd.f32 %v995, %v1047
        %v1083 = vadd.f32 %v997, %v1047
        %v1084 = vlaneseq
        %v1085 = vshrl.u32 %v1084, 7
        %v1086 = vsub.s32 2, %v1085
        %v1087 = vrot.slane %v318, %v1086
        %v1088 = vadd.f32 %v1052, %v1087
        %v1089 = vadd.f32 %v1053, %v1087
        %v1090 = vadd.f32 %v1054, %v1087
        %v1091 = vadd.f32 %v1055, %v1087
        %v1092 = vadd.f32 %v1056, %v1087
        %v1093 = vadd.f32 %v1057, %v1087
        %v1094 = vadd.f32 %v1058, %v1087
        %v1095 = vadd.f32 %v1059, %v1087
        %v1096 = vadd.f32 %v1060, %v1087
        %v1097 = vadd.f32 %v1061, %v1087
        %v1098 = vadd.f32 %v1062, %v1087
        %v1099 = vadd.f32 %v1063, %v1087
        %v1100 = vadd.f32 %v1064, %v1087
        %v1101 = vadd.f32 %v1065, %v1087
        %v1102 = vadd.f32 %v1066, %v1087
        %v1103 = vadd.f32 %v1067, %v1087
        %v1104 = vadd.f32 %v1068, %v1087
        %v1105 = vadd.f32 %v1069, %v1087
        %v1106 = vadd.f32 %v1070, %v1087
        %v1107 = vadd.f32 %v1071, %v1087
        %v1108 = vadd.f32 %v1072, %v1087
        %v1109 = vadd.f32 %v1073, %v1087
        %v1110 = vadd.f32 %v1074, %v1087
        %v1111 = vadd.f32 %v1075, %v1087
        %v1112 = vadd.f32 %v1076, %v1087
        %v1113 = vadd.f32 %v1077, %v1087
        %v1114 = vadd.f32 %v1078, %v1087
        %v1115 = vadd.f32 %v1079, %v1087
        %v1116 = vadd.f32 %v1080, %v1087
        %v1117 = vadd.f32 %v1081, %v1087
        %v1118 = vadd.f32 %v1082, %v1087
        %v1119 = vadd.f32 %v1083, %v1087
        %v1120 = vmax.f32 %v1088, 0.0
        %v1121 = vmax.f32 %v1089, 0.0
        %v1122 = vmax.f32 %v1090, 0.0
        %v1123 = vmax.f32 %v1091, 0.0
        %v1124 = vmax.f32 %v1092, 0.0
        %v1125 = vmax.f32 %v1093, 0.0
        %v1126 = vmax.f32 %v1094, 0.0
        %v1127 = vmax.f32 %v1095, 0.0
        %v1128 = vmax.f32 %v1096, 0.0
        %v1129 = vmax.f32 %v1097, 0.0
        %v1130 = vmax.f32 %v1098, 0.0
        %v1131 = vmax.f32 %v1099, 0.0
        %v1132 = vmax.f32 %v1100, 0.0
        %v1133 = vmax.f32 %v1101, 0.0
        %v1134 = vmax.f32 %v1102, 0.0
        %v1135 = vmax.f32 %v1103, 0.0
        %v1136 = vmax.f32 %v1104, 0.0
        %v1137 = vmax.f32 %v1105, 0.0
        %v1138 = vmax.f32 %v1106, 0.0
        %v1139 = vmax.f32 %v1107, 0.0
        %v1140 = vmax.f32 %v1108, 0.0
        %v1141 = vmax.f32 %v1109, 0.0
        %v1142 = vmax.f32 %v1110, 0.0
        %v1143 = vmax.f32 %v1111, 0.0
        %v1144 = vmax.f32 %v1112, 0.0
        %v1145 = vmax.f32 %v1113, 0.0
        %v1146 = vmax.f32 %v1114, 0.0
        %v1147 = vmax.f32 %v1115, 0.0
        %v1148 = vmax.f32 %v1116, 0.0
        %v1149 = vmax.f32 %v1117, 0.0
        %v1150 = vmax.f32 %v1118, 0.0
        %v1151 = vmax.f32 %v1119, 0.0
        %v1184 = vcombine.low %v1120, %v1121
        %v1185 = vcombine.low %v1122, %v1123
        %v1187 = vunpack.c.l.s4 1983009808
        %v1188 = vunpack.c.0.s8 %v1187
        %v1189 = vlaneseq
        %v1190 = vshrl.u32 %v1189, 7
        %v1191 = vsub.s32 %v1188, %v1190
        %v1192 = vrot.slane %v1184, %v1191
        %v1194 = vunpack.c.l.s4 1983009808
        %v1195 = vunpack.c.0.s8 %v1194
        %v1196 = vlaneseq
        %v1197 = vshrl.u32 %v1196, 7
        %v1198 = vsub.s32 %v1195, %v1197
        %v1199 = vrot.slane %v1185, %v1198
        %v1200 = vcombine.low %v1192, %v1199
        %v1201 = vcombine.low %v1124, %v1125
        %v1202 = vcombine.low %v1126, %v1127
        %v1204 = vunpack.c.l.s4 1983009808
        %v1205 = vunpack.c.0.s8 %v1204
        %v1206 = vlaneseq
        %v1207 = vshrl.u32 %v1206, 7
        %v1208 = vsub.s32 %v1205, %v1207
        %v1209 = vrot.slane %v1201, %v1208
        %v1211 = vunpack.c.l.s4 1983009808
        %v1212 = vunpack.c.0.s8 %v1211
        %v1213 = vlaneseq
        %v1214 = vshrl.u32 %v1213, 7
        %v1215 = vsub.s32 %v1212, %v1214
        %v1216 = vrot.slane %v1202, %v1215
        %v1217 = vcombine.low %v1209, %v1216
        %v1218 = vcombine.low %v1128, %v1129
        %v1219 = vcombine.low %v1130, %v1131
        %v1221 = vunpack.c.l.s4 1983009808
        %v1222 = vunpack.c.0.s8 %v1221
        %v1223 = vlaneseq
        %v1224 = vshrl.u32 %v1223, 7
        %v1225 = vsub.s32 %v1222, %v1224
        %v1226 = vrot.slane %v1218, %v1225
        %v1228 = vunpack.c.l.s4 1983009808
        %v1229 = vunpack.c.0.s8 %v1228
        %v1230 = vlaneseq
        %v1231 = vshrl.u32 %v1230, 7
        %v1232 = vsub.s32 %v1229, %v1231
        %v1233 = vrot.slane %v1219, %v1232
        %v1234 = vcombine.low %v1226, %v1233
        %v1235 = vcombine.low %v1132, %v1133
        %v1236 = vcombine.low %v1134, %v1135
        %v1238 = vunpack.c.l.s4 1983009808
        %v1239 = vunpack.c.0.s8 %v1238
        %v1240 = vlaneseq
        %v1241 = vshrl.u32 %v1240, 7
        %v1242 = vsub.s32 %v1239, %v1241
        %v1243 = vrot.slane %v1235, %v1242
        %v1245 = vunpack.c.l.s4 1983009808
        %v1246 = vunpack.c.0.s8 %v1245
        %v1247 = vlaneseq
        %v1248 = vshrl.u32 %v1247, 7
        %v1249 = vsub.s32 %v1246, %v1248
        %v1250 = vrot.slane %v1236, %v1249
        %v1251 = vcombine.low %v1243, %v1250
        %v1252 = vcombine.low %v1136, %v1137
        %v1253 = vcombine.low %v1138, %v1139
        %v1255 = vunpack.c.l.s4 1983009808
        %v1256 = vunpack.c.0.s8 %v1255
        %v1257 = vlaneseq
        %v1258 = vshrl.u32 %v1257, 7
        %v1259 = vsub.s32 %v1256, %v1258
        %v1260 = vrot.slane %v1252, %v1259
        %v1262 = vunpack.c.l.s4 1983009808
        %v1263 = vunpack.c.0.s8 %v1262
        %v1264 = vlaneseq
        %v1265 = vshrl.u32 %v1264, 7
        %v1266 = vsub.s32 %v1263, %v1265
        %v1267 = vrot.slane %v1253, %v1266
        %v1268 = vcombine.low %v1260, %v1267
        %v1269 = vcombine.low %v1140, %v1141
        %v1270 = vcombine.low %v1142, %v1143
        %v1272 = vunpack.c.l.s4 1983009808
        %v1273 = vunpack.c.0.s8 %v1272
        %v1274 = vlaneseq
        %v1275 = vshrl.u32 %v1274, 7
        %v1276 = vsub.s32 %v1273, %v1275
        %v1277 = vrot.slane %v1269, %v1276
        %v1279 = vunpack.c.l.s4 1983009808
        %v1280 = vunpack.c.0.s8 %v1279
        %v1281 = vlaneseq
        %v1282 = vshrl.u32 %v1281, 7
        %v1283 = vsub.s32 %v1280, %v1282
        %v1284 = vrot.slane %v1270, %v1283
        %v1285 = vcombine.low %v1277, %v1284
        %v1286 = vcombine.low %v1144, %v1145
        %v1287 = vcombine.low %v1146, %v1147
        %v1289 = vunpack.c.l.s4 1983009808
        %v1290 = vunpack.c.0.s8 %v1289
        %v1291 = vlaneseq
        %v1292 = vshrl.u32 %v1291, 7
        %v1293 = vsub.s32 %v1290, %v1292
        %v1294 = vrot.slane %v1286, %v1293
        %v1296 = vunpack.c.l.s4 1983009808
        %v1297 = vunpack.c.0.s8 %v1296
        %v1298 = vlaneseq
        %v1299 = vshrl.u32 %v1298, 7
        %v1300 = vsub.s32 %v1297, %v1299
        %v1301 = vrot.slane %v1287, %v1300
        %v1302 = vcombine.low %v1294, %v1301
        %v1303 = vcombine.low %v1148, %v1149
        %v1304 = vcombine.low %v1150, %v1151
        %v1306 = vunpack.c.l.s4 1983009808
        %v1307 = vunpack.c.0.s8 %v1306
        %v1308 = vlaneseq
        %v1309 = vshrl.u32 %v1308, 7
        %v1310 = vsub.s32 %v1307, %v1309
        %v1311 = vrot.slane %v1303, %v1310
        %v1313 = vunpack.c.l.s4 1983009808
        %v1314 = vunpack.c.0.s8 %v1313
        %v1315 = vlaneseq
        %v1316 = vshrl.u32 %v1315, 7
        %v1317 = vsub.s32 %v1314, %v1316
        %v1318 = vrot.slane %v1304, %v1317
        %v1319 = vcombine.low %v1311, %v1318
        %v1328 = vpack.c.bf16 %v1217, %v1200
        %v1329 = vpack.c.bf16 %v1251, %v1234
        %v1330 = vpack.c.bf16 %v1285, %v1268
        %v1331 = vpack.c.bf16 %v1319, %v1302
        %s1332 = scalar_lea.vmem [#allocation2], 128
        %v1333 = vld [vmem:[%s1332] sm:$0xf]
        %v1334 = vld [vmem:[%s1332 + $0x4] sm:$0xf]
        %v1335 = vld [vmem:[%s1332 + $0x8] sm:$0xf]
        %v1336 = vld [vmem:[%s1332 + $0xc] sm:$0xf]
        %v1337 = vld [vmem:[%s1332 + $0x10] sm:$0xf]
        %v1338 = vld [vmem:[%s1332 + $0x14] sm:$0xf]
        %v1339 = vld [vmem:[%s1332 + $0x18] sm:$0xf]
        %v1340 = vld [vmem:[%s1332 + $0x1c] sm:$0xf]
        %v1341 = vld [vmem:[%s1332 + $0x20] sm:$0xf]
        %v1342 = vld [vmem:[%s1332 + $0x24] sm:$0xf]
        %v1343 = vld [vmem:[%s1332 + $0x28] sm:$0xf]
        %v1344 = vld [vmem:[%s1332 + $0x2c] sm:$0xf]
        %v1345 = vld [vmem:[%s1332 + $0x30] sm:$0xf]
        %v1346 = vld [vmem:[%s1332 + $0x34] sm:$0xf]
        %v1347 = vld [vmem:[%s1332 + $0x38] sm:$0xf]
        %v1348 = vld [vmem:[%s1332 + $0x3c] sm:$0xf]
        %v1349 = vlaneseq
        %v1350 = vshrl.u32 %v1349, 7
        %v1351 = vsub.s32 3, %v1350
        %v1352 = vrot.slane %v318, %v1351
        %v1369 = vunpack.c.l.b16 %v1333
        %v1370 = vunpack.c.l.b16 %v1334
        %v1371 = vunpack.c.l.b16 %v1335
        %v1372 = vunpack.c.l.b16 %v1336
        %v1373 = vunpack.c.l.b16 %v1337
        %v1374 = vunpack.c.l.b16 %v1338
        %v1375 = vunpack.c.l.b16 %v1339
        %v1376 = vunpack.c.l.b16 %v1340
        %v1377 = vunpack.c.l.b16 %v1341
        %v1378 = vunpack.c.l.b16 %v1342
        %v1379 = vunpack.c.l.b16 %v1343
        %v1380 = vunpack.c.l.b16 %v1344
        %v1381 = vunpack.c.l.b16 %v1345
        %v1382 = vunpack.c.l.b16 %v1346
        %v1383 = vunpack.c.l.b16 %v1347
        %v1384 = vunpack.c.l.b16 %v1348
        %v1385 = vpack.c.b16 %v1370, %v1369
        %v1386 = vpack.c.b16 %v1372, %v1371
        %v1387 = vpack.c.b16 %v1374, %v1373
        %v1388 = vpack.c.b16 %v1376, %v1375
        %v1389 = vpack.c.b16 %v1378, %v1377
        %v1390 = vpack.c.b16 %v1380, %v1379
        %v1391 = vpack.c.b16 %v1382, %v1381
        %v1392 = vpack.c.b16 %v1384, %v1383
        %1401 = vmatprep.subr.bf16.mxu0 0
        %1402 = vmatpush1.bf16.msra.mxu0 %v1392
        %1403 = vmatprep.subr.bf16.mxu0 0
        %1404 = vmatpush1.bf16.msra.mxu0 %v1391
        %1405 = vmatprep.subr.bf16.mxu0 0
        %1406 = vmatpush1.bf16.msra.mxu0 %v1390
        %1407 = vmatprep.subr.bf16.mxu0 0
        %1408 = vmatpush1.bf16.msra.mxu0 %v1389
        %1409 = vmatprep.subr.bf16.mxu0 0
        %1410 = vmatpush1.bf16.msra.mxu0 %v1388
        %1411 = vmatprep.subr.bf16.mxu0 0
        %1412 = vmatpush1.bf16.msra.mxu0 %v1387
        %1413 = vmatprep.subr.bf16.mxu0 0
        %1414 = vmatpush1.bf16.msra.mxu0 %v1386
        %1415 = vmatprep.subr.bf16.mxu0 0
        %1416 = vmatpush1.bf16.msra.mxu0 %v1385
        %1417 = vmatprep.subr.bf16.mxu0 0
        %1418 = vmatpush2.bf16.msra.mxu0 0
        %1419 = vmatprep.subr.bf16.mxu0 0
        %1420 = vmatpush2.bf16.msra.mxu0 0
        %1421 = vmatprep.subr.bf16.mxu0 0
        %1422 = vmatpush2.bf16.msra.mxu0 0
        %1423 = vmatprep.subr.bf16.mxu0 0
        %1424 = vmatpush2.bf16.msra.mxu0 0
        %1425 = vmatprep.subr.bf16.mxu0 0
        %1426 = vmatpush2.bf16.msra.mxu0 0
        %1427 = vmatprep.subr.bf16.mxu0 0
        %1428 = vmatpush2.bf16.msra.mxu0 0
        %1429 = vmatprep.subr.bf16.mxu0 0
        %1430 = vmatpush2.bf16.msra.mxu0 0
        %1431 = vmatprep.subr.bf16.mxu0 0
        %1432 = vmatpush2.bf16.msra.mxu0 0
        %1433 = vmatprep.mubr.bf16.mxu0 0
        %1434 = vmatmul.mubr.bf16.gmra.mxu0 %v1328
        %v1435 = vpop.f32.mrf.mxu0
        %v1436 = vadd.f32 %v1352, %v1435
        %v1437 = vpop.f32.mrf.mxu0
        %v1438 = vpop.f32.mrf.mxu0
        %v1439 = vadd.f32 %v1352, %v1438
        %v1440 = vpop.f32.mrf.mxu0
        %1441 = vmatprep.mubr.bf16.mxu0 0
        %1442 = vmatmul.mubr.bf16.gmra.mxu0 %v1329
        %v1443 = vpop.f32.mrf.mxu0
        %v1444 = vadd.f32 %v1352, %v1443
        %v1445 = vpop.f32.mrf.mxu0
        %v1446 = vpop.f32.mrf.mxu0
        %v1447 = vadd.f32 %v1352, %v1446
        %v1448 = vpop.f32.mrf.mxu0
        %1449 = vmatprep.mubr.bf16.mxu0 0
        %1450 = vmatmul.mubr.bf16.gmra.mxu0 %v1330
        %v1451 = vpop.f32.mrf.mxu0
        %v1452 = vadd.f32 %v1352, %v1451
        %v1453 = vpop.f32.mrf.mxu0
        %v1454 = vpop.f32.mrf.mxu0
        %v1455 = vadd.f32 %v1352, %v1454
        %v1456 = vpop.f32.mrf.mxu0
        %1457 = vmatprep.mubr.bf16.mxu0 0
        %1458 = vmatmul.mubr.bf16.gmra.mxu0 %v1331
        %v1459 = vpop.f32.mrf.mxu0
        %v1460 = vadd.f32 %v1352, %v1459
        %v1461 = vpop.f32.mrf.mxu0
        %v1462 = vpop.f32.mrf.mxu0
        %v1463 = vadd.f32 %v1352, %v1462
        %v1464 = vpop.f32.mrf.mxu0
        %1465 = vdwg.mxu0
        %v1466 = vmax.f32 %v1436, 0.0
        %v1467 = vmax.f32 %v1439, 0.0
        %v1468 = vmax.f32 %v1444, 0.0
        %v1469 = vmax.f32 %v1447, 0.0
        %v1470 = vmax.f32 %v1452, 0.0
        %v1471 = vmax.f32 %v1455, 0.0
        %v1472 = vmax.f32 %v1460, 0.0
        %v1473 = vmax.f32 %v1463, 0.0
        %v1474 = vpack.c.bf16 %v1467, %v1466
        %v1475 = vpack.c.bf16 %v1469, %v1468
        %v1476 = vpack.c.bf16 %v1471, %v1470
        %v1477 = vpack.c.bf16 %v1473, %v1472
        %s1478 = scalar_lea.vmem [#allocation2], 192
        %v1479 = vld [vmem:[%s1478] sm:$0xf]
        %v1480 = vld [vmem:[%s1478 + $0x4] sm:$0xf]
        %v1481 = vld [vmem:[%s1478 + $0x8] sm:$0xf]
        %v1482 = vld [vmem:[%s1478 + $0xc] sm:$0xf]
        %v1483 = vld [vmem:[%s1478 + $0x10] sm:$0xf]
        %v1484 = vld [vmem:[%s1478 + $0x14] sm:$0xf]
        %v1485 = vld [vmem:[%s1478 + $0x18] sm:$0xf]
        %v1486 = vld [vmem:[%s1478 + $0x1c] sm:$0xf]
        %v1487 = vld [vmem:[%s1478 + $0x20] sm:$0xf]
        %v1488 = vld [vmem:[%s1478 + $0x24] sm:$0xf]
        %v1489 = vld [vmem:[%s1478 + $0x28] sm:$0xf]
        %v1490 = vld [vmem:[%s1478 + $0x2c] sm:$0xf]
        %v1491 = vld [vmem:[%s1478 + $0x30] sm:$0xf]
        %v1492 = vld [vmem:[%s1478 + $0x34] sm:$0xf]
        %v1493 = vld [vmem:[%s1478 + $0x38] sm:$0xf]
        %v1494 = vld [vmem:[%s1478 + $0x3c] sm:$0xf]
        %v1495 = vlaneseq
        %v1496 = vshrl.u32 %v1495, 7
        %v1497 = vsub.s32 4, %v1496
        %v1498 = vrot.slane %v318, %v1497
        %v1515 = vunpack.c.l.b16 %v1479
        %v1516 = vunpack.c.l.b16 %v1480
        %v1517 = vunpack.c.l.b16 %v1481
        %v1518 = vunpack.c.l.b16 %v1482
        %v1519 = vunpack.c.l.b16 %v1483
        %v1520 = vunpack.c.l.b16 %v1484
        %v1521 = vunpack.c.l.b16 %v1485
        %v1522 = vunpack.c.l.b16 %v1486
        %v1523 = vunpack.c.l.b16 %v1487
        %v1524 = vunpack.c.l.b16 %v1488
        %v1525 = vunpack.c.l.b16 %v1489
        %v1526 = vunpack.c.l.b16 %v1490
        %v1527 = vunpack.c.l.b16 %v1491
        %v1528 = vunpack.c.l.b16 %v1492
        %v1529 = vunpack.c.l.b16 %v1493
        %v1530 = vunpack.c.l.b16 %v1494
        %v1531 = vpack.c.b16 %v1516, %v1515
        %v1532 = vpack.c.b16 %v1518, %v1517
        %v1533 = vpack.c.b16 %v1520, %v1519
        %v1534 = vpack.c.b16 %v1522, %v1521
        %v1535 = vpack.c.b16 %v1524, %v1523
        %v1536 = vpack.c.b16 %v1526, %v1525
        %v1537 = vpack.c.b16 %v1528, %v1527
        %v1538 = vpack.c.b16 %v1530, %v1529
        %1547 = vmatprep.subr.bf16.mxu0 0
        %1548 = vmatpush1.bf16.msra.mxu0 %v1538
        %1549 = vmatprep.subr.bf16.mxu0 0
        %1550 = vmatpush1.bf16.msra.mxu0 %v1537
        %1551 = vmatprep.subr.bf16.mxu0 0
        %1552 = vmatpush1.bf16.msra.mxu0 %v1536
        %1553 = vmatprep.subr.bf16.mxu0 0
        %1554 = vmatpush1.bf16.msra.mxu0 %v1535
        %1555 = vmatprep.subr.bf16.mxu0 0
        %1556 = vmatpush1.bf16.msra.mxu0 %v1534
        %1557 = vmatprep.subr.bf16.mxu0 0
        %1558 = vmatpush1.bf16.msra.mxu0 %v1533
        %1559 = vmatprep.subr.bf16.mxu0 0
        %1560 = vmatpush1.bf16.msra.mxu0 %v1532
        %1561 = vmatprep.subr.bf16.mxu0 0
        %1562 = vmatpush1.bf16.msra.mxu0 %v1531
        %1563 = vmatprep.subr.bf16.mxu0 0
        %1564 = vmatpush2.bf16.msra.mxu0 0
        %1565 = vmatprep.subr.bf16.mxu0 0
        %1566 = vmatpush2.bf16.msra.mxu0 0
        %1567 = vmatprep.subr.bf16.mxu0 0
        %1568 = vmatpush2.bf16.msra.mxu0 0
        %1569 = vmatprep.subr.bf16.mxu0 0
        %1570 = vmatpush2.bf16.msra.mxu0 0
        %1571 = vmatprep.subr.bf16.mxu0 0
        %1572 = vmatpush2.bf16.msra.mxu0 0
        %1573 = vmatprep.subr.bf16.mxu0 0
        %1574 = vmatpush2.bf16.msra.mxu0 0
        %1575 = vmatprep.subr.bf16.mxu0 0
        %1576 = vmatpush2.bf16.msra.mxu0 0
        %1577 = vmatprep.subr.bf16.mxu0 0
        %1578 = vmatpush2.bf16.msra.mxu0 0
        %1579 = vmatprep.mubr.bf16.mxu0 0
        %1580 = vmatmul.mubr.bf16.gmra.mxu0 %v1474
        %v1581 = vpop.f32.mrf.mxu0
        %v1582 = vadd.f32 %v1498, %v1581
        %v1583 = vpop.f32.mrf.mxu0
        %v1584 = vpop.f32.mrf.mxu0
        %v1585 = vadd.f32 %v1498, %v1584
        %v1586 = vpop.f32.mrf.mxu0
        %1587 = vmatprep.mubr.bf16.mxu0 0
        %1588 = vmatmul.mubr.bf16.gmra.mxu0 %v1475
        %v1589 = vpop.f32.mrf.mxu0
        %v1590 = vadd.f32 %v1498, %v1589
        %v1591 = vpop.f32.mrf.mxu0
        %v1592 = vpop.f32.mrf.mxu0
        %v1593 = vadd.f32 %v1498, %v1592
        %v1594 = vpop.f32.mrf.mxu0
        %1595 = vmatprep.mubr.bf16.mxu0 0
        %1596 = vmatmul.mubr.bf16.gmra.mxu0 %v1476
        %v1597 = vpop.f32.mrf.mxu0
        %v1598 = vadd.f32 %v1498, %v1597
        %v1599 = vpop.f32.mrf.mxu0
        %v1600 = vpop.f32.mrf.mxu0
        %v1601 = vadd.f32 %v1498, %v1600
        %v1602 = vpop.f32.mrf.mxu0
        %1603 = vmatprep.mubr.bf16.mxu0 0
        %1604 = vmatmul.mubr.bf16.gmra.mxu0 %v1477
        %v1605 = vpop.f32.mrf.mxu0
        %v1606 = vadd.f32 %v1498, %v1605
        %v1607 = vpop.f32.mrf.mxu0
        %v1608 = vpop.f32.mrf.mxu0
        %v1609 = vadd.f32 %v1498, %v1608
        %v1610 = vpop.f32.mrf.mxu0
        %1611 = vdwg.mxu0
        %v1612 = vmax.f32 %v1582, 0.0
        %v1613 = vmax.f32 %v1585, 0.0
        %v1614 = vmax.f32 %v1590, 0.0
        %v1615 = vmax.f32 %v1593, 0.0
        %v1616 = vmax.f32 %v1598, 0.0
        %v1617 = vmax.f32 %v1601, 0.0
        %v1618 = vmax.f32 %v1606, 0.0
        %v1619 = vmax.f32 %v1609, 0.0
        %v1620 = vpack.c.bf16 %v1613, %v1612
        %v1621 = vpack.c.bf16 %v1615, %v1614
        %v1622 = vpack.c.bf16 %v1617, %v1616
        %v1623 = vpack.c.bf16 %v1619, %v1618
        %s1624 = scalar_lea.vmem [#allocation2], 256
        %v1625 = vld [vmem:[%s1624] sm:$0xf]
        %v1626 = vld [vmem:[%s1624 + $0x4] sm:$0xf]
        %v1627 = vld [vmem:[%s1624 + $0x8] sm:$0xf]
        %v1628 = vld [vmem:[%s1624 + $0xc] sm:$0xf]
        %v1629 = vld [vmem:[%s1624 + $0x10] sm:$0xf]
        %v1630 = vld [vmem:[%s1624 + $0x14] sm:$0xf]
        %v1631 = vld [vmem:[%s1624 + $0x18] sm:$0xf]
        %v1632 = vld [vmem:[%s1624 + $0x1c] sm:$0xf]
        %v1633 = vld [vmem:[%s1624 + $0x20] sm:$0xf]
        %v1634 = vld [vmem:[%s1624 + $0x24] sm:$0xf]
        %v1635 = vld [vmem:[%s1624 + $0x28] sm:$0xf]
        %v1636 = vld [vmem:[%s1624 + $0x2c] sm:$0xf]
        %v1637 = vld [vmem:[%s1624 + $0x30] sm:$0xf]
        %v1638 = vld [vmem:[%s1624 + $0x34] sm:$0xf]
        %v1639 = vld [vmem:[%s1624 + $0x38] sm:$0xf]
        %v1640 = vld [vmem:[%s1624 + $0x3c] sm:$0xf]
        %v1641 = vlaneseq
        %v1642 = vshrl.u32 %v1641, 7
        %v1643 = vsub.s32 5, %v1642
        %v1644 = vrot.slane %v318, %v1643
        %v1661 = vunpack.c.l.b16 %v1625
        %v1662 = vunpack.c.l.b16 %v1626
        %v1663 = vunpack.c.l.b16 %v1627
        %v1664 = vunpack.c.l.b16 %v1628
        %v1665 = vunpack.c.l.b16 %v1629
        %v1666 = vunpack.c.l.b16 %v1630
        %v1667 = vunpack.c.l.b16 %v1631
        %v1668 = vunpack.c.l.b16 %v1632
        %v1669 = vunpack.c.l.b16 %v1633
        %v1670 = vunpack.c.l.b16 %v1634
        %v1671 = vunpack.c.l.b16 %v1635
        %v1672 = vunpack.c.l.b16 %v1636
        %v1673 = vunpack.c.l.b16 %v1637
        %v1674 = vunpack.c.l.b16 %v1638
        %v1675 = vunpack.c.l.b16 %v1639
        %v1676 = vunpack.c.l.b16 %v1640
        %v1677 = vpack.c.b16 %v1662, %v1661
        %v1678 = vpack.c.b16 %v1664, %v1663
        %v1679 = vpack.c.b16 %v1666, %v1665
        %v1680 = vpack.c.b16 %v1668, %v1667
        %v1681 = vpack.c.b16 %v1670, %v1669
        %v1682 = vpack.c.b16 %v1672, %v1671
        %v1683 = vpack.c.b16 %v1674, %v1673
        %v1684 = vpack.c.b16 %v1676, %v1675
        %1693 = vmatprep.subr.bf16.mxu0 0
        %1694 = vmatpush1.bf16.msra.mxu0 %v1684
        %1695 = vmatprep.subr.bf16.mxu0 0
        %1696 = vmatpush1.bf16.msra.mxu0 %v1683
        %1697 = vmatprep.subr.bf16.mxu0 0
        %1698 = vmatpush1.bf16.msra.mxu0 %v1682
        %1699 = vmatprep.subr.bf16.mxu0 0
        %1700 = vmatpush1.bf16.msra.mxu0 %v1681
        %1701 = vmatprep.subr.bf16.mxu0 0
        %1702 = vmatpush1.bf16.msra.mxu0 %v1680
        %1703 = vmatprep.subr.bf16.mxu0 0
        %1704 = vmatpush1.bf16.msra.mxu0 %v1679
        %1705 = vmatprep.subr.bf16.mxu0 0
        %1706 = vmatpush1.bf16.msra.mxu0 %v1678
        %1707 = vmatprep.subr.bf16.mxu0 0
        %1708 = vmatpush1.bf16.msra.mxu0 %v1677
        %1709 = vmatprep.subr.bf16.mxu0 0
        %1710 = vmatpush2.bf16.msra.mxu0 0
        %1711 = vmatprep.subr.bf16.mxu0 0
        %1712 = vmatpush2.bf16.msra.mxu0 0
        %1713 = vmatprep.subr.bf16.mxu0 0
        %1714 = vmatpush2.bf16.msra.mxu0 0
        %1715 = vmatprep.subr.bf16.mxu0 0
        %1716 = vmatpush2.bf16.msra.mxu0 0
        %1717 = vmatprep.subr.bf16.mxu0 0
        %1718 = vmatpush2.bf16.msra.mxu0 0
        %1719 = vmatprep.subr.bf16.mxu0 0
        %1720 = vmatpush2.bf16.msra.mxu0 0
        %1721 = vmatprep.subr.bf16.mxu0 0
        %1722 = vmatpush2.bf16.msra.mxu0 0
        %1723 = vmatprep.subr.bf16.mxu0 0
        %1724 = vmatpush2.bf16.msra.mxu0 0
        %1725 = vmatprep.mubr.bf16.mxu0 0
        %1726 = vmatmul.mubr.bf16.gmra.mxu0 %v1620
        %v1727 = vpop.f32.mrf.mxu0
        %v1728 = vadd.f32 %v1644, %v1727
        %v1729 = vpop.f32.mrf.mxu0
        %v1730 = vpop.f32.mrf.mxu0
        %v1731 = vadd.f32 %v1644, %v1730
        %v1732 = vpop.f32.mrf.mxu0
        %1733 = vmatprep.mubr.bf16.mxu0 0
        %1734 = vmatmul.mubr.bf16.gmra.mxu0 %v1621
        %v1735 = vpop.f32.mrf.mxu0
        %v1736 = vadd.f32 %v1644, %v1735
        %v1737 = vpop.f32.mrf.mxu0
        %v1738 = vpop.f32.mrf.mxu0
        %v1739 = vadd.f32 %v1644, %v1738
        %v1740 = vpop.f32.mrf.mxu0
        %1741 = vmatprep.mubr.bf16.mxu0 0
        %1742 = vmatmul.mubr.bf16.gmra.mxu0 %v1622
        %v1743 = vpop.f32.mrf.mxu0
        %v1744 = vadd.f32 %v1644, %v1743
        %v1745 = vpop.f32.mrf.mxu0
        %v1746 = vpop.f32.mrf.mxu0
        %v1747 = vadd.f32 %v1644, %v1746
        %v1748 = vpop.f32.mrf.mxu0
        %1749 = vmatprep.mubr.bf16.mxu0 0
        %1750 = vmatmul.mubr.bf16.gmra.mxu0 %v1623
        %v1751 = vpop.f32.mrf.mxu0
        %v1752 = vadd.f32 %v1644, %v1751
        %v1753 = vpop.f32.mrf.mxu0
        %v1754 = vpop.f32.mrf.mxu0
        %v1755 = vadd.f32 %v1644, %v1754
        %v1756 = vpop.f32.mrf.mxu0
        %1757 = vdwg.mxu0
        %v1758 = vpack.c.bf16 %v1731, %v1728
        %v1759 = vpack.c.bf16 %v1739, %v1736
        %v1760 = vpack.c.bf16 %v1747, %v1744
        %v1761 = vpack.c.bf16 %v1755, %v1752
        %v1766 = vunpack.c.l.b16 %v1758
        %v1767 = vunpack.c.h.b16 %v1758
        %v1768 = vunpack.c.l.b16 %v1759
        %v1769 = vunpack.c.h.b16 %v1759
        %v1770 = vunpack.c.l.b16 %v1760
        %v1771 = vunpack.c.h.b16 %v1760
        %v1772 = vunpack.c.l.b16 %v1761
        %v1773 = vunpack.c.h.b16 %v1761
        %v1774 = vpack.c.b16 %v1766, %v1766
        %v1775 = vpack.c.b16 %v1767, %v1767
        %v1776 = vpack.c.b16 %v1768, %v1768
        %v1777 = vpack.c.b16 %v1769, %v1769
        %v1778 = vpack.c.b16 %v1770, %v1770
        %v1779 = vpack.c.b16 %v1771, %v1771
        %v1780 = vpack.c.b16 %v1772, %v1772
        %v1781 = vpack.c.b16 %v1773, %v1773
        %1790 = vst [vmem:[%s303] sm:$0xf] %v1774
        %1791 = vst [vmem:[%s303 + $0x4] sm:$0xf] %v1775
        %1792 = vst [vmem:[%s303 + $0x8] sm:$0xf] %v1776
        %1793 = vst [vmem:[%s303 + $0xc] sm:$0xf] %v1777
        %1794 = vst [vmem:[%s303 + $0x10] sm:$0xf] %v1778
        %1795 = vst [vmem:[%s303 + $0x14] sm:$0xf] %v1779
        %1796 = vst [vmem:[%s303 + $0x18] sm:$0xf] %v1780
        %1797 = vst [vmem:[%s303 + $0x1c] sm:$0xf] %v1781
        %s1798 = sand.u32 %s187, 1
        %s1799 = scalar_lea.sflag [#allocation4], %s1798
        %s1800 = sand.u32 %s187, 1
        %s1801 = smul.addr %s1800, 32
        %s1802 = scalar_lea.vmem [#allocation5], %s1801
        // Predicated region
        $region53: #{tpu_custom_call.1} parent=47 // pred_check
          %p1803 = pneg %p197
        $region54: #{tpu_custom_call.1} parent=47 // pred_check_branch
          %1805 = sbr.rel (%p1803) target = $region56
        $region55: #{tpu_custom_call.1} parent=47 // pred_region
          %s1806 = smul.u32 4, %s22
          %s1808 = ssub.s32 512, 512
          %1809 = vsyncadd %s1799, %s1808
          %s1810 = smul.addr %s1806, 2
          %s1811 = smul.addr %s1810, 64
          %s1812 = scalar_lea.hbm %s7, %s1811
          %s1813 = sshll.u32 %s1802, 4
          %s1814 = int_to_ptr.vmem [resolvable:$true] %s1813
          %1819 = dma.vmem_to_hbm [thread:$0]  %s1814, 512, %s1812, %s1799, 64, 64, 4
        $region56: #{tpu_custom_call.1} parent=47 // pred_fallthru
          _
      $region48: #{tpu_custom_call.1} parent=5 // pred_fallthru
        _
      %p1820 = scmp.le.s32.totalorder 2, %s17
      // Predicated region
      $region57: #{tpu_custom_call.1} parent=5 // pred_check
        %p1821 = pneg %p1820
      $region58: #{tpu_custom_call.1} parent=5 // pred_check_branch
        %1823 = sbr.rel (%p1821) target = $region60
      $region59: #{tpu_custom_call.1} parent=5 // pred_region
        %s1824 = ssub.s32 %s17, 2
        // Predicated region
        $region61: #{tpu_custom_call.1} parent=59 // pred_check
          %p1825 = pneg %p203
        $region62: #{tpu_custom_call.1} parent=59 // pred_check_branch
          %1827 = sbr.rel (%p1825) target = $region64
        $region63: #{tpu_custom_call.1} parent=59 // pred_region
          %s1828 = sand.u32 %s188, 1
          %s1829 = scalar_lea.sflag [#allocation4], %s1828
          %s1830 = sand.u32 %s188, 1
          %s1831 = smul.addr %s1830, 32
          %s1832 = scalar_lea.vmem [#allocation5], %s1831
          %1833 = dma.done %s1829, 512
        $region64: #{tpu_custom_call.1} parent=59 // pred_fallthru
          _
      $region60: #{tpu_custom_call.1} parent=5 // pred_fallthru
        _
    $region6: #{tpu_custom_call.1} parent=1 // loop_footer
      %s21 = sadd.s32 1, %s17
    $region7: #{tpu_custom_call.1} parent=1 // loop_footer_branch
      %16 = sbr.rel target = $region3
    $region8: #{tpu_custom_call.1} parent=1 // loop_exit
      _
    %1834 = vsyncpa [#allocation3], 1
    %s1835 = scalar_lea.sflag [#allocation3], 1
    %1836 = vsyncpa %s1835, 1
    %1837 = vsyncpa [#allocation4], 1
    %s1838 = scalar_lea.sflag [#allocation4], 1
    %1839 = vsyncpa %s1838, 1

</llo_original>
